<compile_context>
chip_gen: v6e
topology: v6e:2x2x1
jax: 0.10.0
libtpu: 0.0.40
codegen_flags: <defaults>
</compile_context>

<pallas_src>
import functools

import jax
import jax.numpy as jnp
from jax.experimental import pallas as pl
from jax.experimental.pallas import tpu as pltpu


# ----------------------------- helpers ---------------------------------------


def _cdiv(a, b):
    return -(-a // b)


def _round_up(a, b):
    return _cdiv(a, b) * b


def _choose_tile_g(num_groups, k, widths_padded):
    """Pick groups-per-grid-step (and the padded group count).

    Priorities:
      1) big feature-block DMAs: tile_g*K rows in ~[1024, rows_cap] to amortize the
         ~0.35us per-step overhead and stay near the HBM roofline,
      2) keep >= 8 grid steps when the problem allows it, so each v7x TensorCore
         still gets 3-4 pipelined iterations (megacore) instead of exposed DMA,
      3) tile_g divides G exactly (no pad copy of the feature slab) and is 8-aligned,
      4) keep the f32 activation working set well inside v7x's 64 MiB VMEM.
    Returns (tile_g, g_padded)."""
    max_w = _round_up(max(widths_padded), 128)
    # ~2 live f32 activation copies of (rows, max_w) under ~16 MiB.
    rows_cap = max(512, min(4096, (16 << 20) // (8 * max_w)))

    cands = [d for d in range(1, num_groups + 1)
             if num_groups % d == 0 and (d % 8 == 0 or d == num_groups)]
    fitting = [d for d in cands if d * k <= rows_cap]
    if fitting:
        with_steps = [d for d in fitting if num_groups // d >= 8]
        if with_steps:
            pick = max(with_steps)
            if pick * k < 1024:            # don't shrink below ~1024 rows for step count
                bigger = [d for d in fitting if d * k >= 1024]
                if bigger:
                    pick = min(bigger)
        else:
            pick = max(fitting)            # small problem: one / few big steps
        return pick, num_groups
    # Fallback (awkward G): pad G up to a multiple of an 8-aligned tile.  Costs one
    # pad copy of the feature slab; only hit when G has no usable divisors.
    tile = max(8, (rows_cap // max(k, 1)) // 8 * 8)
    return tile, _round_up(num_groups, tile)


def _vmem_estimate(tile_g, k, cin, widths_padded):
    """Rough per-kernel VMEM footprint (bytes), including lane padding and the
    default double-buffering of every BlockSpec operand."""
    lane = lambda c: _round_up(c, 128)
    rows = tile_g * k
    feat = 2 * rows * lane(cin) * 2                                   # bf16 grouped feats
    cent = 2 * _round_up(tile_g, 8) * lane(cin) * 2                   # bf16 centroid offsets
    wgt = 0
    prev = cin
    for w in widths_padded:
        wgt += 2 * (_round_up(prev, 16) * lane(w) * 2 + 8 * lane(w) * 4)
        prev = w
    out = 2 * _round_up(tile_g, 16) * lane(widths_padded[-1]) * 2     # bf16 pooled output
    acts = 2 * rows * lane(max(widths_padded)) * 4                    # f32 intermediates
    return feat + cent + wgt + out + acts


# ----------------------------- Pallas kernel ---------------------------------


def _mlp_maxpool_kernel(feat_ref, cent_ref, *args, tile_g, k, cin, n_layers):
    """Centroid subtraction + shared per-point MLP + max-pool over neighbours.

    feat_ref: (TILE_G*K, Cin)  bf16 grouped [point-feats, raw xyz] (lanes = channels)
    cent_ref: (TILE_G, Cin)    bf16 per-group offsets (zeros on feature channels,
                               centroid xyz on the last 3 channels)
    args:     w_0, b_0, ..., w_{L-1}, b_{L-1}, out_ref
              w_j: (C_j, C_{j+1}) bf16,  b_j: (1, C_{j+1}) f32
    out_ref:  (TILE_G, C_L_padded) bf16 pooled features (lane-dense store)
    """
    out_ref = args[-1]
    wb = args[:-1]

    # Relative coordinates: subtract the group centroid (broadcast over K).
    x = feat_ref[...].reshape(tile_g, k, cin)
    x = (x - cent_ref[...][:, None, :]).reshape(tile_g * k, cin)      # bf16 MXU operand

    h = None
    for j in range(n_layers):
        w = wb[2 * j][...]                                            # (C_j, C_{j+1}) bf16
        b = wb[2 * j + 1][...]                                        # (1, C_{j+1}) f32
        h = jnp.dot(x, w, preferred_element_type=jnp.float32)         # MXU, f32 accumulate
        h = jnp.maximum(h + b, 0.0)                                   # f32 bias + ReLU
        if j + 1 < n_layers:
            x = h.astype(w.dtype)                                     # bf16 for next layer

    cout = h.shape[-1]
    pooled = jnp.max(h.reshape(tile_g, k, cout), axis=1)              # max over K neighbours
    out_ref[...] = pooled.astype(out_ref.dtype)


def grouped_mlp_maxpool(grouped, cent_offset, layers):
    """grouped [B,S,K,Cin] (bf16), cent_offset [B,S,Cin] (bf16) -> pooled [B,S,Cout] bf16."""
    B, S, K, Cin = grouped.shape
    G = B * S
    n_layers = len(layers)
    widths = [int(w.shape[1]) for w, _ in layers]
    cout = widths[-1]
    cout_pad = _round_up(cout, 128)          # lane-dense output store
    widths_p = widths[:-1] + [cout_pad]

    tile_g, g_pad = _choose_tile_g(G, K, widths_p)

    feats = grouped.reshape(G, K, Cin)
    cents = cent_offset.reshape(G, Cin)
    if g_pad != G:                           # rare fallback; tile_g | G in the common case
        feats = jnp.pad(feats, ((0, g_pad - G), (0, 0), (0, 0)))
        cents = jnp.pad(cents, ((0, g_pad - G), (0, 0)))
    feats = feats.reshape(g_pad * K, Cin)    # groups*neighbours on the sublane dim

    wb_inputs, wb_specs = [], []
    for j, (w, b) in enumerate(layers):
        w = w.astype(jnp.bfloat16)
        b = b.reshape(1, -1).astype(jnp.float32)
        if j == n_layers - 1 and cout_pad != cout:
            # Zero-pad the last layer so the kernel writes a 128-lane-multiple block
            # (unmasked vst); padded channels are ReLU(0+0)=0 and sliced off below.
            w = jnp.pad(w, ((0, 0), (0, cout_pad - cout)))
            b = jnp.pad(b, ((0, 0), (0, cout_pad - cout)))
        wb_inputs.append(w)
        wb_specs.append(pl.BlockSpec(tuple(int(d) for d in w.shape), lambda i: (0, 0)))  # resident
        wb_inputs.append(b)
        wb_specs.append(pl.BlockSpec(tuple(int(d) for d in b.shape), lambda i: (0, 0)))  # resident

    est = _vmem_estimate(tile_g, K, Cin, widths_p)
    vmem_limit = int(min(max(2 * est + (4 << 20), 32 << 20), 48 << 20))  # safe on 64 MiB v7x

    kernel = functools.partial(
        _mlp_maxpool_kernel, tile_g=tile_g, k=K, cin=Cin, n_layers=n_layers)

    out = pl.pallas_call(
        kernel,
        out_shape=jax.ShapeDtypeStruct((g_pad, cout_pad), jnp.bfloat16),
        grid=(g_pad // tile_g,),
        in_specs=[pl.BlockSpec((tile_g * K, Cin), lambda i: (i, 0)),
                  pl.BlockSpec((tile_g, Cin), lambda i: (i, 0))] + wb_specs,
        out_specs=pl.BlockSpec((tile_g, cout_pad), lambda i: (i, 0)),
        compiler_params=pltpu.CompilerParams(
            dimension_semantics=("parallel",),
            vmem_limit_bytes=vmem_limit),
    )(feats, cents, *wb_inputs)
    return out[:G, :cout].reshape(B, S, cout)


# --------------------------- plain-JAX glue -----------------------------------


def index_points(points, idx):
    """points [B, N, C], idx [B, ...] (int) -> [B, ..., C]."""
    return jax.vmap(lambda p, i: p[i])(points, idx)


def farthest_point_sample(xyz, npoint, key):
    """xyz: [B, N, 3] -> centroid indices [B, npoint] (random initial point)."""
    B, N, _ = xyz.shape

    def body(i, state):
        centroids, distance, farthest = state
        centroids = centroids.at[:, i].set(farthest)
        centroid = jnp.take_along_axis(xyz, farthest[:, None, None], axis=1)  # [B,1,3]
        dist = jnp.sum((xyz - centroid) ** 2, axis=-1)                        # [B,N]
        distance = jnp.minimum(distance, dist)
        farthest = jnp.argmax(distance, axis=-1).astype(jnp.int32)
        return centroids, distance, farthest

    centroids = jnp.zeros((B, npoint), dtype=jnp.int32)
    distance = jnp.full((B, N), 1e10, dtype=xyz.dtype)
    farthest = jax.random.randint(key, (B,), 0, N, dtype=jnp.int32)
    centroids, _, _ = jax.lax.fori_loop(0, npoint, body, (centroids, distance, farthest))
    return centroids


def square_distance(src, dst):
    """src [B,S,3], dst [B,N,3] -> [B,S,N] squared distances."""
    return jnp.sum((src[:, :, None, :] - dst[:, None, :, :]) ** 2, axis=-1)


def query_ball_point(radius, nsample, xyz, new_xyz):
    """Ball query exactly as in the PointNet++ reference implementation."""
    B, N, _ = xyz.shape
    S = new_xyz.shape[1]
    sqrdists = square_distance(new_xyz, xyz)                                  # [B,S,N]
    group_idx = jnp.broadcast_to(jnp.arange(N, dtype=jnp.int32), (B, S, N))
    group_idx = jnp.where(sqrdists > radius ** 2, jnp.int32(N), group_idx)
    group_idx = jnp.sort(group_idx, axis=-1)[:, :, :nsample]
    group_first = jnp.broadcast_to(group_idx[:, :, :1], group_idx.shape)
    group_idx = jnp.where(group_idx == N, group_first, group_idx)
    return group_idx


# --------------------------- forward pass -------------------------------------


@functools.partial(jax.jit, static_argnames=("npoint", "radius_list", "nsample_list"))
def pointnet_sa_msg_forward(xyz, points, params, fps_key, *,
                            npoint, radius_list, nsample_list):
    """Forward pass of PointNetSetAbstractionMsg (points input required).

    xyz:    [B, 3, N]  (channels-first, as in PyTorch)
    points: [B, D, N]
    params: per-scale tuple of ((W, b), ...) layer params, W: [Cin_j, Cout_j]
    Returns new_xyz [B, 3, S] (f32), new_points_concat [B, sum(mlp[-1]), S] (bf16).
    """
    xyz_t = jnp.transpose(xyz, (0, 2, 1))        # [B, N, 3]
    points_t = jnp.transpose(points, (0, 2, 1))  # [B, N, D]
    B, N, _ = xyz_t.shape
    D = points_t.shape[-1]

    fps_idx = farthest_point_sample(xyz_t, npoint, fps_key)     # [B, S]
    new_xyz = index_points(xyz_t, fps_idx)                      # [B, S, 3] f32

    # Pre-concatenated [point-feats, raw xyz] slab in bf16: the per-scale ball-query
    # gather then produces its (largest) [B,S,K,Cin] intermediate directly in bf16
    # with a single gather (no separate concat / subtract / cast passes in HBM).
    combined = jnp.concatenate([points_t, xyz_t], axis=-1).astype(jnp.bfloat16)   # [B,N,D+3]
    # Per-group channel offsets (zeros on feature channels, centroid on xyz channels);
    # subtracted in-kernel to form relative coordinates.
    cent_offset = jnp.concatenate(
        [jnp.zeros((B, npoint, D), dtype=new_xyz.dtype), new_xyz], axis=-1
    ).astype(jnp.bfloat16)                                                        # [B,S,D+3]

    pooled_list = []
    for i, radius in enumerate(radius_list):
        k = nsample_list[i]
        idx = query_ball_point(radius, k, xyz_t, new_xyz)       # [B, S, K]
        grouped = index_points(combined, idx)                   # [B,S,K,D+3] bf16
        pooled_list.append(grouped_mlp_maxpool(grouped, cent_offset, params[i]))

    new_points = jnp.concatenate(pooled_list, axis=-1)          # [B, S, sum(Cout_i)] bf16
    return (jnp.transpose(new_xyz, (0, 2, 1)),                  # [B, 3, S]
            jnp.transpose(new_points, (0, 2, 1)))               # [B, D', S]


# --------------------------------- main ----------------------------------------

if __name__ == "__main__":
    # Small, module-consistent shapes.
    B, N, D = 2, 16, 6                 # batch, n_points, point feature dim
    npoint = 8
    radius_list = (0.2, 0.4)
    nsample_list = (8, 16)             # keep K a multiple of 8 (aligned K-axis max-pool)
    mlp_list = ((16, 32), (16, 64))    # per-scale MLP widths
    in_channel = D                     # module uses last_channel = in_channel + 3

    key = jax.random.PRNGKey(0)
    k_xyz, k_pts, k_fps, k_par = jax.random.split(key, 4)
    xyz = jax.random.normal(k_xyz, (B, 3, N), dtype=jnp.float32)
    points = jax.random.normal(k_pts, (B, D, N), dtype=jnp.float32)

    # Deterministic synthetic parameters (shapes follow the module's __init__).
    params = []
    for mlp in mlp_list:
        last = in_channel + 3
        scale_layers = []
        for out_ch in mlp:
            k_par, kw, kb = jax.random.split(k_par, 3)
            w = 0.1 * jax.random.normal(kw, (last, out_ch), dtype=jnp.float32)
            b = 0.01 * jax.random.normal(kb, (out_ch,), dtype=jnp.float32)
            scale_layers.append((w, b))
            last = out_ch
        params.append(tuple(scale_layers))
    params = tuple(params)

    new_xyz, new_points = pointnet_sa_msg_forward(
        xyz, points, params, k_fps,
        npoint=npoint, radius_list=radius_list, nsample_list=nsample_list)
    jax.block_until_ready((new_xyz, new_points))

    d_out = sum(m[-1] for m in mlp_list)
    assert new_xyz.shape == (B, 3, npoint), new_xyz.shape
    assert new_points.shape == (B, d_out, npoint), new_points.shape
    assert bool(jnp.isfinite(new_points.astype(jnp.float32)).all())
    print("KERNEL_OK")
</pallas_src>

<mosaic_0001>
module attributes {stable_mosaic.version = 11 : i64} {
  func.func @_mlp_maxpool_kernel(%arg0: i32, %arg1: memref<128x9xbf16, #tpu.memory_space<vmem>>, %arg2: memref<16x9xbf16, #tpu.memory_space<vmem>>, %arg3: memref<9x16xbf16, #tpu.memory_space<vmem>>, %arg4: memref<1x16xf32, #tpu.memory_space<vmem>>, %arg5: memref<16x128xbf16, #tpu.memory_space<vmem>>, %arg6: memref<1x128xf32, #tpu.memory_space<vmem>>, %arg7: memref<16x128xbf16, #tpu.memory_space<vmem>>) attributes {dimension_semantics = [#tpu.dimension_semantics<parallel>], iteration_bounds = array<i64: 1>, scalar_prefetch = 0 : i64, scratch_operands = 0 : i64, tpu.core_type = #tpu.core_type<tc>, window_params = [{transform_indices = @transform_0, window_bounds = array<i64: 128, 9>}, {transform_indices = @transform_1, window_bounds = array<i64: 16, 9>}, {pipeline_mode = #tpu.pipeline_mode<synchronous>, transform_indices = @transform_2, window_bounds = array<i64: 9, 16>}, {pipeline_mode = #tpu.pipeline_mode<synchronous>, transform_indices = @transform_3, window_bounds = array<i64: 1, 16>}, {pipeline_mode = #tpu.pipeline_mode<synchronous>, transform_indices = @transform_4, window_bounds = array<i64: 16, 128>}, {pipeline_mode = #tpu.pipeline_mode<synchronous>, transform_indices = @transform_5, window_bounds = array<i64: 1, 128>}, {transform_indices = @transform_6, window_bounds = array<i64: 16, 128>}]} {
    %c0 = arith.constant 0 : index
    %c0_0 = arith.constant 0 : index
    %0 = vector.load %arg1[%c0, %c0_0] : memref<128x9xbf16, #tpu.memory_space<vmem>>, vector<128x9xbf16>
    %1 = vector.shape_cast %0 : vector<128x9xbf16> to vector<16x8x9xbf16>
    %c0_1 = arith.constant 0 : index
    %c0_2 = arith.constant 0 : index
    %2 = vector.load %arg2[%c0_1, %c0_2] : memref<16x9xbf16, #tpu.memory_space<vmem>>, vector<16x9xbf16>
    %3 = vector.shape_cast %2 : vector<16x9xbf16> to vector<16x1x9xbf16>
    %4 = vector.broadcast %3 : vector<16x1x9xbf16> to vector<16x8x9xbf16>
    %5 = arith.subf %1, %4 : vector<16x8x9xbf16>
    %6 = vector.shape_cast %5 : vector<16x8x9xbf16> to vector<128x9xbf16>
    %c0_3 = arith.constant 0 : index
    %c0_4 = arith.constant 0 : index
    %7 = vector.load %arg3[%c0_3, %c0_4] : memref<9x16xbf16, #tpu.memory_space<vmem>>, vector<9x16xbf16>
    %c0_5 = arith.constant 0 : index
    %c0_6 = arith.constant 0 : index
    %8 = vector.load %arg4[%c0_5, %c0_6] : memref<1x16xf32, #tpu.memory_space<vmem>>, vector<1x16xf32>
    %cst = arith.constant dense<0.000000e+00> : vector<128x16xf32>
    %9 = tpu.matmul %6, %7, %cst {dimension_numbers = #tpu.dot_dimension_numbers<[1], [0], [0], [1], [0, 0, 1, 1], [], []>} : vector<128x9xbf16>, vector<9x16xbf16>, vector<128x16xf32> -> vector<128x16xf32>
    %10 = vector.broadcast %8 : vector<1x16xf32> to vector<128x16xf32>
    %11 = arith.addf %9, %10 : vector<128x16xf32>
    %cst_7 = arith.constant 0.000000e+00 : f32
    %12 = vector.broadcast %cst_7 : f32 to vector<128x16xf32>
    %13 = arith.maximumf %11, %12 : vector<128x16xf32>
    %14 = arith.truncf %13 : vector<128x16xf32> to vector<128x16xbf16>
    %c0_8 = arith.constant 0 : index
    %c0_9 = arith.constant 0 : index
    %15 = vector.load %arg5[%c0_8, %c0_9] : memref<16x128xbf16, #tpu.memory_space<vmem>>, vector<16x128xbf16>
    %c0_10 = arith.constant 0 : index
    %c0_11 = arith.constant 0 : index
    %16 = vector.load %arg6[%c0_10, %c0_11] : memref<1x128xf32, #tpu.memory_space<vmem>>, vector<1x128xf32>
    %cst_12 = arith.constant dense<0.000000e+00> : vector<128x128xf32>
    %17 = tpu.matmul %14, %15, %cst_12 {dimension_numbers = #tpu.dot_dimension_numbers<[1], [0], [0], [1], [0, 0, 1, 1], [], []>} : vector<128x16xbf16>, vector<16x128xbf16>, vector<128x128xf32> -> vector<128x128xf32>
    %18 = vector.broadcast %16 : vector<1x128xf32> to vector<128x128xf32>
    %19 = arith.addf %17, %18 : vector<128x128xf32>
    %cst_13 = arith.constant 0.000000e+00 : f32
    %20 = vector.broadcast %cst_13 : f32 to vector<128x128xf32>
    %21 = arith.maximumf %19, %20 : vector<128x128xf32>
    %22 = vector.shape_cast %21 : vector<128x128xf32> to vector<16x8x128xf32>
    %cst_14 = arith.constant dense<0xFF800000> : vector<16x128xf32>
    %23 = vector.multi_reduction <maximumf>, %22, %cst_14 [1] : vector<16x8x128xf32> to vector<16x128xf32>
    %24 = arith.truncf %23 : vector<16x128xf32> to vector<16x128xbf16>
    %c0_15 = arith.constant 0 : index
    %c0_16 = arith.constant 0 : index
    %25 = vector.load %arg7[%c0_15, %c0_16] : memref<16x128xbf16, #tpu.memory_space<vmem>>, vector<16x128xbf16>
    tpu.vector_store %arg7[%c0_15, %c0_16], %24 {strides = array<i32>} : memref<16x128xbf16, #tpu.memory_space<vmem>>, vector<16x128xbf16>,
    return
  }
  func.func @transform_0(%arg0: i32) -> (i32, i32) {
    %c0_i32 = arith.constant 0 : i32
    %c0_i32_0 = arith.constant 0 : i32
    return %arg0, %c0_i32 : i32, i32
  }
  func.func @transform_1(%arg0: i32) -> (i32, i32) {
    %c0_i32 = arith.constant 0 : i32
    %c0_i32_0 = arith.constant 0 : i32
    return %arg0, %c0_i32 : i32, i32
  }
  func.func @transform_2(%arg0: i32) -> (i32, i32) {
    %c0_i32 = arith.constant 0 : i32
    %c0_i32_0 = arith.constant 0 : i32
    %c0_i32_1 = arith.constant 0 : i32
    return %c0_i32, %c0_i32_0 : i32, i32
  }
  func.func @transform_3(%arg0: i32) -> (i32, i32) {
    %c0_i32 = arith.constant 0 : i32
    %c0_i32_0 = arith.constant 0 : i32
    %c0_i32_1 = arith.constant 0 : i32
    return %c0_i32, %c0_i32_0 : i32, i32
  }
  func.func @transform_4(%arg0: i32) -> (i32, i32) {
    %c0_i32 = arith.constant 0 : i32
    %c0_i32_0 = arith.constant 0 : i32
    %c0_i32_1 = arith.constant 0 : i32
    return %c0_i32, %c0_i32_0 : i32, i32
  }
  func.func @transform_5(%arg0: i32) -> (i32, i32) {
    %c0_i32 = arith.constant 0 : i32
    %c0_i32_0 = arith.constant 0 : i32
    %c0_i32_1 = arith.constant 0 : i32
    return %c0_i32, %c0_i32_0 : i32, i32
  }
  func.func @transform_6(%arg0: i32) -> (i32, i32) {
    %c0_i32 = arith.constant 0 : i32
    %c0_i32_0 = arith.constant 0 : i32
    return %arg0, %c0_i32 : i32, i32
  }
}

module attributes {stable_mosaic.version = 11 : i64} {
  func.func @_mlp_maxpool_kernel(%arg0: i32, %arg1: memref<256x9xbf16, #tpu.memory_space<vmem>>, %arg2: memref<16x9xbf16, #tpu.memory_space<vmem>>, %arg3: memref<9x16xbf16, #tpu.memory_space<vmem>>, %arg4: memref<1x16xf32, #tpu.memory_space<vmem>>, %arg5: memref<16x128xbf16, #tpu.memory_space<vmem>>, %arg6: memref<1x128xf32, #tpu.memory_space<vmem>>, %arg7: memref<16x128xbf16, #tpu.memory_space<vmem>>) attributes {dimension_semantics = [#tpu.dimension_semantics<parallel>], iteration_bounds = array<i64: 1>, scalar_prefetch = 0 : i64, scratch_operands = 0 : i64, tpu.core_type = #tpu.core_type<tc>, window_params = [{transform_indices = @transform_0, window_bounds = array<i64: 256, 9>}, {transform_indices = @transform_1, window_bounds = array<i64: 16, 9>}, {pipeline_mode = #tpu.pipeline_mode<synchronous>, transform_indices = @transform_2, window_bounds = array<i64: 9, 16>}, {pipeline_mode = #tpu.pipeline_mode<synchronous>, transform_indices = @transform_3, window_bounds = array<i64: 1, 16>}, {pipeline_mode = #tpu.pipeline_mode<synchronous>, transform_indices = @transform_4, window_bounds = array<i64: 16, 128>}, {pipeline_mode = #tpu.pipeline_mode<synchronous>, transform_indices = @transform_5, window_bounds = array<i64: 1, 128>}, {transform_indices = @transform_6, window_bounds = array<i64: 16, 128>}]} {
    %c0 = arith.constant 0 : index
    %c0_0 = arith.constant 0 : index
    %0 = vector.load %arg1[%c0, %c0_0] : memref<256x9xbf16, #tpu.memory_space<vmem>>, vector<256x9xbf16>
    %1 = vector.shape_cast %0 : vector<256x9xbf16> to vector<16x16x9xbf16>
    %c0_1 = arith.constant 0 : index
    %c0_2 = arith.constant 0 : index
    %2 = vector.load %arg2[%c0_1, %c0_2] : memref<16x9xbf16, #tpu.memory_space<vmem>>, vector<16x9xbf16>
    %3 = vector.shape_cast %2 : vector<16x9xbf16> to vector<16x1x9xbf16>
    %4 = vector.broadcast %3 : vector<16x1x9xbf16> to vector<16x16x9xbf16>
    %5 = arith.subf %1, %4 : vector<16x16x9xbf16>
    %6 = vector.shape_cast %5 : vector<16x16x9xbf16> to vector<256x9xbf16>
    %c0_3 = arith.constant 0 : index
    %c0_4 = arith.constant 0 : index
    %7 = vector.load %arg3[%c0_3, %c0_4] : memref<9x16xbf16, #tpu.memory_space<vmem>>, vector<9x16xbf16>
    %c0_5 = arith.constant 0 : index
    %c0_6 = arith.constant 0 : index
    %8 = vector.load %arg4[%c0_5, %c0_6] : memref<1x16xf32, #tpu.memory_space<vmem>>, vector<1x16xf32>
    %cst = arith.constant dense<0.000000e+00> : vector<256x16xf32>
    %9 = tpu.matmul %6, %7, %cst {dimension_numbers = #tpu.dot_dimension_numbers<[1], [0], [0], [1], [0, 0, 1, 1], [], []>} : vector<256x9xbf16>, vector<9x16xbf16>, vector<256x16xf32> -> vector<256x16xf32>
    %10 = vector.broadcast %8 : vector<1x16xf32> to vector<256x16xf32>
    %11 = arith.addf %9, %10 : vector<256x16xf32>
    %cst_7 = arith.constant 0.000000e+00 : f32
    %12 = vector.broadcast %cst_7 : f32 to vector<256x16xf32>
    %13 = arith.maximumf %11, %12 : vector<256x16xf32>
    %14 = arith.truncf %13 : vector<256x16xf32> to vector<256x16xbf16>
    %c0_8 = arith.constant 0 : index
    %c0_9 = arith.constant 0 : index
    %15 = vector.load %arg5[%c0_8, %c0_9] : memref<16x128xbf16, #tpu.memory_space<vmem>>, vector<16x128xbf16>
    %c0_10 = arith.constant 0 : index
    %c0_11 = arith.constant 0 : index
    %16 = vector.load %arg6[%c0_10, %c0_11] : memref<1x128xf32, #tpu.memory_space<vmem>>, vector<1x128xf32>
    %cst_12 = arith.constant dense<0.000000e+00> : vector<256x128xf32>
    %17 = tpu.matmul %14, %15, %cst_12 {dimension_numbers = #tpu.dot_dimension_numbers<[1], [0], [0], [1], [0, 0, 1, 1], [], []>} : vector<256x16xbf16>, vector<16x128xbf16>, vector<256x128xf32> -> vector<256x128xf32>
    %18 = vector.broadcast %16 : vector<1x128xf32> to vector<256x128xf32>
    %19 = arith.addf %17, %18 : vector<256x128xf32>
    %cst_13 = arith.constant 0.000000e+00 : f32
    %20 = vector.broadcast %cst_13 : f32 to vector<256x128xf32>
    %21 = arith.maximumf %19, %20 : vector<256x128xf32>
    %22 = vector.shape_cast %21 : vector<256x128xf32> to vector<16x16x128xf32>
    %cst_14 = arith.constant dense<0xFF800000> : vector<16x128xf32>
    %23 = vector.multi_reduction <maximumf>, %22, %cst_14 [1] : vector<16x16x128xf32> to vector<16x128xf32>
    %24 = arith.truncf %23 : vector<16x128xf32> to vector<16x128xbf16>
    %c0_15 = arith.constant 0 : index
    %c0_16 = arith.constant 0 : index
    %25 = vector.load %arg7[%c0_15, %c0_16] : memref<16x128xbf16, #tpu.memory_space<vmem>>, vector<16x128xbf16>
    tpu.vector_store %arg7[%c0_15, %c0_16], %24 {strides = array<i32>} : memref<16x128xbf16, #tpu.memory_space<vmem>>, vector<16x128xbf16>,
    return
  }
  func.func @transform_0(%arg0: i32) -> (i32, i32) {
    %c0_i32 = arith.constant 0 : i32
    %c0_i32_0 = arith.constant 0 : i32
    return %arg0, %c0_i32 : i32, i32
  }
  func.func @transform_1(%arg0: i32) -> (i32, i32) {
    %c0_i32 = arith.constant 0 : i32
    %c0_i32_0 = arith.constant 0 : i32
    return %arg0, %c0_i32 : i32, i32
  }
  func.func @transform_2(%arg0: i32) -> (i32, i32) {
    %c0_i32 = arith.constant 0 : i32
    %c0_i32_0 = arith.constant 0 : i32
    %c0_i32_1 = arith.constant 0 : i32
    return %c0_i32, %c0_i32_0 : i32, i32
  }
  func.func @transform_3(%arg0: i32) -> (i32, i32) {
    %c0_i32 = arith.constant 0 : i32
    %c0_i32_0 = arith.constant 0 : i32
    %c0_i32_1 = arith.constant 0 : i32
    return %c0_i32, %c0_i32_0 : i32, i32
  }
  func.func @transform_4(%arg0: i32) -> (i32, i32) {
    %c0_i32 = arith.constant 0 : i32
    %c0_i32_0 = arith.constant 0 : i32
    %c0_i32_1 = arith.constant 0 : i32
    return %c0_i32, %c0_i32_0 : i32, i32
  }
  func.func @transform_5(%arg0: i32) -> (i32, i32) {
    %c0_i32 = arith.constant 0 : i32
    %c0_i32_0 = arith.constant 0 : i32
    %c0_i32_1 = arith.constant 0 : i32
    return %c0_i32, %c0_i32_0 : i32, i32
  }
  func.func @transform_6(%arg0: i32) -> (i32, i32) {
    %c0_i32 = arith.constant 0 : i32
    %c0_i32_0 = arith.constant 0 : i32
    return %arg0, %c0_i32 : i32, i32
  }
}

</mosaic_0001>

<llo_original>
// kernel: custom-call.8
$region0: #{custom-call.8}
  %s0 = inlined_call_operand.vmem [shape: f32[2,16], index: 0, kind: output, shape index: {}]

// kernel: pointnet_sa_msg_forward.3
$region0: #{pointnet_sa_msg_forward.3}
  #allocation0 [shape = 'u32[]', space=smem, size = 0x4, offset = 0x4, fixed_abs, tag = 'smem constant byte address 0x4 - core index']
  #allocation1 [shape = 'u32[144,128]{1,0:T(1,128)}', space=vmem, size = 0x12000, scoped, tag = 'internal scratch']
  %s0 = inlined_call_operand.vmem [shape: bf16[256,9], index: 0, kind: input, shape index: {}]
  %s1 = inlined_call_operand.vmem [shape: bf16[16,9], index: 1, kind: input, shape index: {}]
  %s2 = inlined_call_operand.vmem [shape: bf16[9,16], index: 2, kind: input, shape index: {}]
  %s3 = inlined_call_operand.vmem [shape: f32[1,16], index: 3, kind: input, shape index: {}]
  %s4 = inlined_call_operand.vmem [shape: bf16[16,128], index: 4, kind: input, shape index: {}]
  %s5 = inlined_call_operand.vmem [shape: f32[1,128], index: 5, kind: input, shape index: {}]
  %s6 = inlined_call_operand.vmem [shape: bf16[16,128], index: 6, kind: output, shape index: {}]
  %s7 = sld [smem:[#allocation0]]
  $region34: #{pointnet_sa_msg_forward.3} parent=0
    _
  %s9 = ssub.s32 1, %s7
  %s10 = scalar_select 0, %s9, %s7
  // Predicated region
  $region2: #{pointnet_sa_msg_forward.3} parent=0 // pred_check
    _
  $region3: #{pointnet_sa_msg_forward.3} parent=0 // pred_check_branch
    %12 = sbr.rel (0) target = $region5
  $region4: #{pointnet_sa_msg_forward.3} parent=0 // pred_region
    _
  $region5: #{pointnet_sa_msg_forward.3} parent=0 // pred_fallthru
    _
  // Predicated region
  $region6: #{pointnet_sa_msg_forward.3} parent=0 // pred_check
    _
  $region7: #{pointnet_sa_msg_forward.3} parent=0 // pred_check_branch
    %14 = sbr.rel (0) target = $region9
  $region8: #{pointnet_sa_msg_forward.3} parent=0 // pred_region
    _
  $region9: #{pointnet_sa_msg_forward.3} parent=0 // pred_fallthru
    _
  // Predicated region
  $region10: #{pointnet_sa_msg_forward.3} parent=0 // pred_check
    _
  $region11: #{pointnet_sa_msg_forward.3} parent=0 // pred_check_branch
    %16 = sbr.rel (0) target = $region13
  $region12: #{pointnet_sa_msg_forward.3} parent=0 // pred_region
    _
  $region13: #{pointnet_sa_msg_forward.3} parent=0 // pred_fallthru
    _
  // Predicated region
  $region14: #{pointnet_sa_msg_forward.3} parent=0 // pred_check
    _
  $region15: #{pointnet_sa_msg_forward.3} parent=0 // pred_check_branch
    %18 = sbr.rel (0) target = $region17
  $region16: #{pointnet_sa_msg_forward.3} parent=0 // pred_region
    _
  $region17: #{pointnet_sa_msg_forward.3} parent=0 // pred_fallthru
    _
  // Predicated region
  $region18: #{pointnet_sa_msg_forward.3} parent=0 // pred_check
    _
  $region19: #{pointnet_sa_msg_forward.3} parent=0 // pred_check_branch
    %20 = sbr.rel (0) target = $region21
  $region20: #{pointnet_sa_msg_forward.3} parent=0 // pred_region
    _
  $region21: #{pointnet_sa_msg_forward.3} parent=0 // pred_fallthru
    _
  // Predicated region
  $region22: #{pointnet_sa_msg_forward.3} parent=0 // pred_check
    _
  $region23: #{pointnet_sa_msg_forward.3} parent=0 // pred_check_branch
    %22 = sbr.rel (0) target = $region25
  $region24: #{pointnet_sa_msg_forward.3} parent=0 // pred_region
    _
  $region25: #{pointnet_sa_msg_forward.3} parent=0 // pred_fallthru
    _
  %v24 = vld [vmem:[%s0] sm:$0xf]
  %v25 = vld [vmem:[%s0 + $0x4] sm:$0xf]
  %v26 = vld [vmem:[%s0 + $0x8] sm:$0xf]
  %v27 = vld [vmem:[%s0 + $0xc] sm:$0xf]
  %v28 = vld [vmem:[%s0 + $0x10] sm:$0xf]
  %v29 = vld [vmem:[%s0 + $0x14] sm:$0xf]
  %v30 = vld [vmem:[%s0 + $0x18] sm:$0xf]
  %v31 = vld [vmem:[%s0 + $0x1c] sm:$0xf]
  %v32 = vld [vmem:[%s0 + $0x20] sm:$0xf]
  %v33 = vld [vmem:[%s0 + $0x24] sm:$0xf]
  %v34 = vld [vmem:[%s0 + $0x28] sm:$0xf]
  %v35 = vld [vmem:[%s0 + $0x2c] sm:$0xf]
  %v36 = vld [vmem:[%s0 + $0x30] sm:$0xf]
  %v37 = vld [vmem:[%s0 + $0x34] sm:$0xf]
  %v38 = vld [vmem:[%s0 + $0x38] sm:$0xf]
  %v39 = vld [vmem:[%s0 + $0x3c] sm:$0xf]
  %v40 = vld [vmem:[%s0 + $0x40] sm:$0xf]
  %v41 = vld [vmem:[%s0 + $0x44] sm:$0xf]
  %v42 = vld [vmem:[%s0 + $0x48] sm:$0xf]
  %v43 = vld [vmem:[%s0 + $0x4c] sm:$0xf]
  %v44 = vld [vmem:[%s0 + $0x50] sm:$0xf]
  %v45 = vld [vmem:[%s0 + $0x54] sm:$0xf]
  %v46 = vld [vmem:[%s0 + $0x58] sm:$0xf]
  %v47 = vld [vmem:[%s0 + $0x5c] sm:$0xf]
  %v48 = vld [vmem:[%s0 + $0x60] sm:$0xf]
  %v49 = vld [vmem:[%s0 + $0x64] sm:$0xf]
  %v50 = vld [vmem:[%s0 + $0x68] sm:$0xf]
  %v51 = vld [vmem:[%s0 + $0x6c] sm:$0xf]
  %v52 = vld [vmem:[%s0 + $0x70] sm:$0xf]
  %v53 = vld [vmem:[%s0 + $0x74] sm:$0xf]
  %v54 = vld [vmem:[%s0 + $0x78] sm:$0xf]
  %v55 = vld [vmem:[%s0 + $0x7c] sm:$0xf]
  %v56 = vld [vmem:[%s1] sm:$0xf]
  %v57 = vld [vmem:[%s1 + $0x4] sm:$0xf]
  %v61 = vunpack.c.l.s4 1966171168
  %v62 = vunpack.c.0.s8 %v61
  %v63 = vlaneseq
  %v64 = vshrl.u32 %v63, 7
  %v65 = vsub.s32 %v62, %v64
  %v66 = vrot.slane %v56, %v65
  %v67 = vcombine.high %v66, %v66
  %v69 = vunpack.c.l.s4 1966171168
  %v70 = vunpack.c.0.s8 %v69
  %v71 = vlaneseq
  %v72 = vshrl.u32 %v71, 7
  %v73 = vsub.s32 %v70, %v72
  %v74 = vrot.slane %v66, %v73
  %v76 = vunpack.c.l.s4 1966171168
  %v77 = vunpack.c.0.s8 %v76
  %v78 = vlaneseq
  %v79 = vshrl.u32 %v78, 7
  %v80 = vsub.s32 %v77, %v79
  %v81 = vrot.slane %v67, %v80
  %v82 = vcombine.high %v74, %v74
  %v83 = vcombine.high %v81, %v81
  %v85 = vunpack.c.l.s4 1966171168
  %v86 = vunpack.c.0.s8 %v85
  %v87 = vlaneseq
  %v88 = vshrl.u32 %v87, 7
  %v89 = vsub.s32 %v86, %v88
  %v90 = vrot.slane %v57, %v89
  %v91 = vcombine.high %v90, %v90
  %v93 = vunpack.c.l.s4 1966171168
  %v94 = vunpack.c.0.s8 %v93
  %v95 = vlaneseq
  %v96 = vshrl.u32 %v95, 7
  %v97 = vsub.s32 %v94, %v96
  %v98 = vrot.slane %v90, %v97
  %v100 = vunpack.c.l.s4 1966171168
  %v101 = vunpack.c.0.s8 %v100
  %v102 = vlaneseq
  %v103 = vshrl.u32 %v102, 7
  %v104 = vsub.s32 %v101, %v103
  %v105 = vrot.slane %v91, %v104
  %v106 = vcombine.high %v98, %v98
  %v107 = vcombine.high %v105, %v105
  %v108 = vunpack.i.l.s16 %v74
  %v109 = vunpack.i.h.s16 %v74
  %v110 = vunpack.i.l.s16 %v81
  %v111 = vunpack.i.h.s16 %v81
  %v112 = vunpack.i.l.s16 %v82
  %v113 = vunpack.i.h.s16 %v82
  %v114 = vunpack.i.l.s16 %v83
  %v115 = vunpack.i.h.s16 %v83
  %v116 = vunpack.i.l.s16 %v98
  %v117 = vunpack.i.h.s16 %v98
  %v118 = vunpack.i.l.s16 %v105
  %v119 = vunpack.i.h.s16 %v105
  %v120 = vunpack.i.l.s16 %v106
  %v121 = vunpack.i.h.s16 %v106
  %v122 = vunpack.i.l.s16 %v107
  %v123 = vunpack.i.h.s16 %v107
  %v124 = vpack.i.b16 %v108, %v108
  %v125 = vpack.i.b16 %v109, %v109
  %v126 = vpack.i.b16 %v110, %v110
  %v127 = vpack.i.b16 %v111, %v111
  %v128 = vpack.i.b16 %v112, %v112
  %v129 = vpack.i.b16 %v113, %v113
  %v130 = vpack.i.b16 %v114, %v114
  %v131 = vpack.i.b16 %v115, %v115
  %v132 = vpack.i.b16 %v116, %v116
  %v133 = vpack.i.b16 %v117, %v117
  %v134 = vpack.i.b16 %v118, %v118
  %v135 = vpack.i.b16 %v119, %v119
  %v136 = vpack.i.b16 %v120, %v120
  %v137 = vpack.i.b16 %v121, %v121
  %v138 = vpack.i.b16 %v122, %v122
  %v139 = vpack.i.b16 %v123, %v123
  %v140 = vlaneseq
  %v141 = vshrl.u32 %v140, 7
  %v142 = vsub.s32 0, %v141
  %v143 = vrot.slane %v124, %v142
  %v144 = vlaneseq
  %v145 = vshrl.u32 %v144, 7
  %v146 = vsub.s32 0, %v145
  %v147 = vrot.slane %v125, %v146
  %v148 = vlaneseq
  %v149 = vshrl.u32 %v148, 7
  %v150 = vsub.s32 0, %v149
  %v151 = vrot.slane %v126, %v150
  %v152 = vlaneseq
  %v153 = vshrl.u32 %v152, 7
  %v154 = vsub.s32 0, %v153
  %v155 = vrot.slane %v127, %v154
  %v156 = vlaneseq
  %v157 = vshrl.u32 %v156, 7
  %v158 = vsub.s32 0, %v157
  %v159 = vrot.slane %v128, %v158
  %v160 = vlaneseq
  %v161 = vshrl.u32 %v160, 7
  %v162 = vsub.s32 0, %v161
  %v163 = vrot.slane %v129, %v162
  %v164 = vlaneseq
  %v165 = vshrl.u32 %v164, 7
  %v166 = vsub.s32 0, %v165
  %v167 = vrot.slane %v130, %v166
  %v168 = vlaneseq
  %v169 = vshrl.u32 %v168, 7
  %v170 = vsub.s32 0, %v169
  %v171 = vrot.slane %v131, %v170
  %v172 = vlaneseq
  %v173 = vshrl.u32 %v172, 7
  %v174 = vsub.s32 0, %v173
  %v175 = vrot.slane %v132, %v174
  %v176 = vlaneseq
  %v177 = vshrl.u32 %v176, 7
  %v178 = vsub.s32 0, %v177
  %v179 = vrot.slane %v133, %v178
  %v180 = vlaneseq
  %v181 = vshrl.u32 %v180, 7
  %v182 = vsub.s32 0, %v181
  %v183 = vrot.slane %v134, %v182
  %v184 = vlaneseq
  %v185 = vshrl.u32 %v184, 7
  %v186 = vsub.s32 0, %v185
  %v187 = vrot.slane %v135, %v186
  %v188 = vlaneseq
  %v189 = vshrl.u32 %v188, 7
  %v190 = vsub.s32 0, %v189
  %v191 = vrot.slane %v136, %v190
  %v192 = vlaneseq
  %v193 = vshrl.u32 %v192, 7
  %v194 = vsub.s32 0, %v193
  %v195 = vrot.slane %v137, %v194
  %v196 = vlaneseq
  %v197 = vshrl.u32 %v196, 7
  %v198 = vsub.s32 0, %v197
  %v199 = vrot.slane %v138, %v198
  %v200 = vlaneseq
  %v201 = vshrl.u32 %v200, 7
  %v202 = vsub.s32 0, %v201
  %v203 = vrot.slane %v139, %v202
  %v205 = vpack.i.b16 %v143, %v143
  %v207 = vlaneseq
  %v208 = vshrl.u32 %v207, 7
  %v209 = vsub.s32 0, %v208
  %v210 = vrot.slane %v205, %v209
  %v212 = vpack.i.b16 %v147, %v147
  %v214 = vlaneseq
  %v215 = vshrl.u32 %v214, 7
  %v216 = vsub.s32 0, %v215
  %v217 = vrot.slane %v212, %v216
  %v219 = vpack.i.b16 %v151, %v151
  %v221 = vlaneseq
  %v222 = vshrl.u32 %v221, 7
  %v223 = vsub.s32 0, %v222
  %v224 = vrot.slane %v219, %v223
  %v226 = vpack.i.b16 %v155, %v155
  %v228 = vlaneseq
  %v229 = vshrl.u32 %v228, 7
  %v230 = vsub.s32 0, %v229
  %v231 = vrot.slane %v226, %v230
  %v233 = vpack.i.b16 %v159, %v159
  %v235 = vlaneseq
  %v236 = vshrl.u32 %v235, 7
  %v237 = vsub.s32 0, %v236
  %v238 = vrot.slane %v233, %v237
  %v240 = vpack.i.b16 %v163, %v163
  %v242 = vlaneseq
  %v243 = vshrl.u32 %v242, 7
  %v244 = vsub.s32 0, %v243
  %v245 = vrot.slane %v240, %v244
  %v247 = vpack.i.b16 %v167, %v167
  %v249 = vlaneseq
  %v250 = vshrl.u32 %v249, 7
  %v251 = vsub.s32 0, %v250
  %v252 = vrot.slane %v247, %v251
  %v254 = vpack.i.b16 %v171, %v171
  %v256 = vlaneseq
  %v257 = vshrl.u32 %v256, 7
  %v258 = vsub.s32 0, %v257
  %v259 = vrot.slane %v254, %v258
  %v261 = vpack.i.b16 %v175, %v175
  %v263 = vlaneseq
  %v264 = vshrl.u32 %v263, 7
  %v265 = vsub.s32 0, %v264
  %v266 = vrot.slane %v261, %v265
  %v268 = vpack.i.b16 %v179, %v179
  %v270 = vlaneseq
  %v271 = vshrl.u32 %v270, 7
  %v272 = vsub.s32 0, %v271
  %v273 = vrot.slane %v268, %v272
  %v275 = vpack.i.b16 %v183, %v183
  %v277 = vlaneseq
  %v278 = vshrl.u32 %v277, 7
  %v279 = vsub.s32 0, %v278
  %v280 = vrot.slane %v275, %v279
  %v282 = vpack.i.b16 %v187, %v187
  %v284 = vlaneseq
  %v285 = vshrl.u32 %v284, 7
  %v286 = vsub.s32 0, %v285
  %v287 = vrot.slane %v282, %v286
  %v289 = vpack.i.b16 %v191, %v191
  %v291 = vlaneseq
  %v292 = vshrl.u32 %v291, 7
  %v293 = vsub.s32 0, %v292
  %v294 = vrot.slane %v289, %v293
  %v296 = vpack.i.b16 %v195, %v195
  %v298 = vlaneseq
  %v299 = vshrl.u32 %v298, 7
  %v300 = vsub.s32 0, %v299
  %v301 = vrot.slane %v296, %v300
  %v303 = vpack.i.b16 %v199, %v199
  %v305 = vlaneseq
  %v306 = vshrl.u32 %v305, 7
  %v307 = vsub.s32 0, %v306
  %v308 = vrot.slane %v303, %v307
  %v310 = vpack.i.b16 %v203, %v203
  %v312 = vlaneseq
  %v313 = vshrl.u32 %v312, 7
  %v314 = vsub.s32 0, %v313
  %v315 = vrot.slane %v310, %v314
  %v332 = vunpack.c.l.b16 %v210
  %v333 = vunpack.c.l.b16 %v217
  %v334 = vunpack.c.l.b16 %v224
  %v335 = vunpack.c.l.b16 %v231
  %v336 = vunpack.c.l.b16 %v238
  %v337 = vunpack.c.l.b16 %v245
  %v338 = vunpack.c.l.b16 %v252
  %v339 = vunpack.c.l.b16 %v259
  %v340 = vunpack.c.l.b16 %v266
  %v341 = vunpack.c.l.b16 %v273
  %v342 = vunpack.c.l.b16 %v280
  %v343 = vunpack.c.l.b16 %v287
  %v344 = vunpack.c.l.b16 %v294
  %v345 = vunpack.c.l.b16 %v301
  %v346 = vunpack.c.l.b16 %v308
  %v347 = vunpack.c.l.b16 %v315
  %v348 = vpack.c.b16 %v332, %v332
  %v349 = vpack.c.b16 %v333, %v333
  %v350 = vpack.c.b16 %v334, %v334
  %v351 = vpack.c.b16 %v335, %v335
  %v352 = vpack.c.b16 %v336, %v336
  %v353 = vpack.c.b16 %v337, %v337
  %v354 = vpack.c.b16 %v338, %v338
  %v355 = vpack.c.b16 %v339, %v339
  %v356 = vpack.c.b16 %v340, %v340
  %v357 = vpack.c.b16 %v341, %v341
  %v358 = vpack.c.b16 %v342, %v342
  %v359 = vpack.c.b16 %v343, %v343
  %v360 = vpack.c.b16 %v344, %v344
  %v361 = vpack.c.b16 %v345, %v345
  %v362 = vpack.c.b16 %v346, %v346
  %v363 = vpack.c.b16 %v347, %v347
  %v380 = vsub.bf16 %v24, %v348
  %v381 = vsub.bf16 %v25, %v348
  %v382 = vsub.bf16 %v26, %v349
  %v383 = vsub.bf16 %v27, %v349
  %v384 = vsub.bf16 %v28, %v350
  %v385 = vsub.bf16 %v29, %v350
  %v386 = vsub.bf16 %v30, %v351
  %v387 = vsub.bf16 %v31, %v351
  %v388 = vsub.bf16 %v32, %v352
  %v389 = vsub.bf16 %v33, %v352
  %v390 = vsub.bf16 %v34, %v353
  %v391 = vsub.bf16 %v35, %v353
  %v392 = vsub.bf16 %v36, %v354
  %v393 = vsub.bf16 %v37, %v354
  %v394 = vsub.bf16 %v38, %v355
  %v395 = vsub.bf16 %v39, %v355
  %v396 = vsub.bf16 %v40, %v356
  %v397 = vsub.bf16 %v41, %v356
  %v398 = vsub.bf16 %v42, %v357
  %v399 = vsub.bf16 %v43, %v357
  %v400 = vsub.bf16 %v44, %v358
  %v401 = vsub.bf16 %v45, %v358
  %v402 = vsub.bf16 %v46, %v359
  %v403 = vsub.bf16 %v47, %v359
  %v404 = vsub.bf16 %v48, %v360
  %v405 = vsub.bf16 %v49, %v360
  %v406 = vsub.bf16 %v50, %v361
  %v407 = vsub.bf16 %v51, %v361
  %v408 = vsub.bf16 %v52, %v362
  %v409 = vsub.bf16 %v53, %v362
  %v410 = vsub.bf16 %v54, %v363
  %v411 = vsub.bf16 %v55, %v363
  %v412 = vld [vmem:[%s2] sm:$0xf]
  %v413 = vld [vmem:[%s2 + $0x4] sm:$0x1]
  %v414 = vld [vmem:[%s3] sm:$0x1]
  %v416 = vlaneseq
  %v417 = vshrl.u32 %v416, 7
  %v418 = vsub.s32 0, %v417
  %v419 = vrot.slane %v414, %v418
  %v453 = vunpack.c.l.b16 %v380
  %v454 = vunpack.c.l.b16 %v381
  %v455 = vunpack.c.l.b16 %v382
  %v456 = vunpack.c.l.b16 %v383
  %v457 = vunpack.c.l.b16 %v384
  %v458 = vunpack.c.l.b16 %v385
  %v459 = vunpack.c.l.b16 %v386
  %v460 = vunpack.c.l.b16 %v387
  %v461 = vunpack.c.l.b16 %v388
  %v462 = vunpack.c.l.b16 %v389
  %v463 = vunpack.c.l.b16 %v390
  %v464 = vunpack.c.l.b16 %v391
  %v465 = vunpack.c.l.b16 %v392
  %v466 = vunpack.c.l.b16 %v393
  %v467 = vunpack.c.l.b16 %v394
  %v468 = vunpack.c.l.b16 %v395
  %v469 = vunpack.c.l.b16 %v396
  %v470 = vunpack.c.l.b16 %v397
  %v471 = vunpack.c.l.b16 %v398
  %v472 = vunpack.c.l.b16 %v399
  %v473 = vunpack.c.l.b16 %v400
  %v474 = vunpack.c.l.b16 %v401
  %v475 = vunpack.c.l.b16 %v402
  %v476 = vunpack.c.l.b16 %v403
  %v477 = vunpack.c.l.b16 %v404
  %v478 = vunpack.c.l.b16 %v405
  %v479 = vunpack.c.l.b16 %v406
  %v480 = vunpack.c.l.b16 %v407
  %v481 = vunpack.c.l.b16 %v408
  %v482 = vunpack.c.l.b16 %v409
  %v483 = vunpack.c.l.b16 %v410
  %v484 = vunpack.c.l.b16 %v411
  %v485 = vpack.c.b16 %v454, %v453
  %v486 = vpack.c.b16 %v456, %v455
  %v487 = vpack.c.b16 %v458, %v457
  %v488 = vpack.c.b16 %v460, %v459
  %v489 = vpack.c.b16 %v462, %v461
  %v490 = vpack.c.b16 %v464, %v463
  %v491 = vpack.c.b16 %v466, %v465
  %v492 = vpack.c.b16 %v468, %v467
  %v493 = vpack.c.b16 %v470, %v469
  %v494 = vpack.c.b16 %v472, %v471
  %v495 = vpack.c.b16 %v474, %v473
  %v496 = vpack.c.b16 %v476, %v475
  %v497 = vpack.c.b16 %v478, %v477
  %v498 = vpack.c.b16 %v480, %v479
  %v499 = vpack.c.b16 %v482, %v481
  %v500 = vpack.c.b16 %v484, %v483
  %v503 = vunpack.c.l.b16 %v412
  %v504 = vunpack.c.l.b16 %v413
  %v505 = vpack.c.b16 %v504, %v503
  %vm506 = vcmask 72704
  %v508 = vsel %vm506, %v485, 0
  %v511 = vsel %vm506, %v486, 0
  %v514 = vsel %vm506, %v487, 0
  %v517 = vsel %vm506, %v488, 0
  %v520 = vsel %vm506, %v489, 0
  %v523 = vsel %vm506, %v490, 0
  %v526 = vsel %vm506, %v491, 0
  %v529 = vsel %vm506, %v492, 0
  %v532 = vsel %vm506, %v493, 0
  %v535 = vsel %vm506, %v494, 0
  %v538 = vsel %vm506, %v495, 0
  %v541 = vsel %vm506, %v496, 0
  %v544 = vsel %vm506, %v497, 0
  %v547 = vsel %vm506, %v498, 0
  %v550 = vsel %vm506, %v499, 0
  %v553 = vsel %vm506, %v500, 0
  %vm555 = vcmask 1043456
  %vm556 = vcmask 1044480
  %v557 = vsel %vm555, 4294967295, 65535
  %v558 = vsel %vm556, %v557, 0
  %v560 = vand.u32 %v505, %v558
  %562 = vmatprep.subr.bf16.mxu0 0
  %563 = vmatpush1.bf16.msra.mxu0 0
  %564 = vmatprep.subr.bf16.mxu0 0
  %565 = vmatpush1.bf16.msra.mxu0 0
  %566 = vmatprep.subr.bf16.mxu0 0
  %567 = vmatpush1.bf16.msra.mxu0 0
  %568 = vmatprep.subr.bf16.mxu0 0
  %569 = vmatpush1.bf16.msra.mxu0 0
  %570 = vmatprep.subr.bf16.mxu0 0
  %571 = vmatpush1.bf16.msra.mxu0 0
  %572 = vmatprep.subr.bf16.mxu0 0
  %573 = vmatpush1.bf16.msra.mxu0 0
  %574 = vmatprep.subr.bf16.mxu0 0
  %575 = vmatpush1.bf16.msra.mxu0 0
  %576 = vmatprep.subr.bf16.mxu0 0
  %577 = vmatpush1.bf16.msra.mxu0 %v560
  %578 = vmatprep.subr.bf16.mxu0 0
  %579 = vmatpush2.bf16.msra.mxu0 0
  %580 = vmatprep.subr.bf16.mxu0 0
  %581 = vmatpush2.bf16.msra.mxu0 0
  %582 = vmatprep.subr.bf16.mxu0 0
  %583 = vmatpush2.bf16.msra.mxu0 0
  %584 = vmatprep.subr.bf16.mxu0 0
  %585 = vmatpush2.bf16.msra.mxu0 0
  %586 = vmatprep.subr.bf16.mxu0 0
  %587 = vmatpush2.bf16.msra.mxu0 0
  %588 = vmatprep.subr.bf16.mxu0 0
  %589 = vmatpush2.bf16.msra.mxu0 0
  %590 = vmatprep.subr.bf16.mxu0 0
  %591 = vmatpush2.bf16.msra.mxu0 0
  %592 = vmatprep.subr.bf16.mxu0 0
  %593 = vmatpush2.bf16.msra.mxu0 0
  %594 = vmatprep.mubr.bf16.mxu0 0
  %595 = vmatmul.mubr.bf16.gmra.mxu0 %v508
  %v596 = vpop.f32.mrf.mxu0
  %v597 = vadd.f32 %v419, %v596
  %v598 = vpop.f32.mrf.mxu0
  %v599 = vpop.f32.mrf.mxu0
  %v600 = vadd.f32 %v419, %v599
  %v601 = vpop.f32.mrf.mxu0
  %602 = vmatprep.mubr.bf16.mxu0 0
  %603 = vmatmul.mubr.bf16.gmra.mxu0 %v511
  %v604 = vpop.f32.mrf.mxu0
  %v605 = vadd.f32 %v419, %v604
  %v606 = vpop.f32.mrf.mxu0
  %v607 = vpop.f32.mrf.mxu0
  %v608 = vadd.f32 %v419, %v607
  %v609 = vpop.f32.mrf.mxu0
  %610 = vmatprep.mubr.bf16.mxu0 0
  %611 = vmatmul.mubr.bf16.gmra.mxu0 %v514
  %v612 = vpop.f32.mrf.mxu0
  %v613 = vadd.f32 %v419, %v612
  %v614 = vpop.f32.mrf.mxu0
  %v615 = vpop.f32.mrf.mxu0
  %v616 = vadd.f32 %v419, %v615
  %v617 = vpop.f32.mrf.mxu0
  %618 = vmatprep.mubr.bf16.mxu0 0
  %619 = vmatmul.mubr.bf16.gmra.mxu0 %v517
  %v620 = vpop.f32.mrf.mxu0
  %v621 = vadd.f32 %v419, %v620
  %v622 = vpop.f32.mrf.mxu0
  %v623 = vpop.f32.mrf.mxu0
  %v624 = vadd.f32 %v419, %v623
  %v625 = vpop.f32.mrf.mxu0
  %626 = vmatprep.mubr.bf16.mxu0 0
  %627 = vmatmul.mubr.bf16.gmra.mxu0 %v520
  %v628 = vpop.f32.mrf.mxu0
  %v629 = vadd.f32 %v419, %v628
  %v630 = vpop.f32.mrf.mxu0
  %v631 = vpop.f32.mrf.mxu0
  %v632 = vadd.f32 %v419, %v631
  %v633 = vpop.f32.mrf.mxu0
  %634 = vmatprep.mubr.bf16.mxu0 0
  %635 = vmatmul.mubr.bf16.gmra.mxu0 %v523
  %v636 = vpop.f32.mrf.mxu0
  %v637 = vadd.f32 %v419, %v636
  %v638 = vpop.f32.mrf.mxu0
  %v639 = vpop.f32.mrf.mxu0
  %v640 = vadd.f32 %v419, %v639
  %v641 = vpop.f32.mrf.mxu0
  %642 = vmatprep.mubr.bf16.mxu0 0
  %643 = vmatmul.mubr.bf16.gmra.mxu0 %v526
  %v644 = vpop.f32.mrf.mxu0
  %v645 = vadd.f32 %v419, %v644
  %v646 = vpop.f32.mrf.mxu0
  %v647 = vpop.f32.mrf.mxu0
  %v648 = vadd.f32 %v419, %v647
  %v649 = vpop.f32.mrf.mxu0
  %650 = vmatprep.mubr.bf16.mxu0 0
  %651 = vmatmul.mubr.bf16.gmra.mxu0 %v529
  %v652 = vpop.f32.mrf.mxu0
  %v653 = vadd.f32 %v419, %v652
  %v654 = vpop.f32.mrf.mxu0
  %v655 = vpop.f32.mrf.mxu0
  %v656 = vadd.f32 %v419, %v655
  %v657 = vpop.f32.mrf.mxu0
  %658 = vmatprep.mubr.bf16.mxu0 0
  %659 = vmatmul.mubr.bf16.gmra.mxu0 %v532
  %v660 = vpop.f32.mrf.mxu0
  %v661 = vadd.f32 %v419, %v660
  %v662 = vpop.f32.mrf.mxu0
  %v663 = vpop.f32.mrf.mxu0
  %v664 = vadd.f32 %v419, %v663
  %v665 = vpop.f32.mrf.mxu0
  %666 = vmatprep.mubr.bf16.mxu0 0
  %667 = vmatmul.mubr.bf16.gmra.mxu0 %v535
  %v668 = vpop.f32.mrf.mxu0
  %v669 = vadd.f32 %v419, %v668
  %v670 = vpop.f32.mrf.mxu0
  %v671 = vpop.f32.mrf.mxu0
  %v672 = vadd.f32 %v419, %v671
  %v673 = vpop.f32.mrf.mxu0
  %674 = vmatprep.mubr.bf16.mxu0 0
  %675 = vmatmul.mubr.bf16.gmra.mxu0 %v538
  %v676 = vpop.f32.mrf.mxu0
  %v677 = vadd.f32 %v419, %v676
  %v678 = vpop.f32.mrf.mxu0
  %v679 = vpop.f32.mrf.mxu0
  %v680 = vadd.f32 %v419, %v679
  %v681 = vpop.f32.mrf.mxu0
  %682 = vmatprep.mubr.bf16.mxu0 0
  %683 = vmatmul.mubr.bf16.gmra.mxu0 %v541
  %v684 = vpop.f32.mrf.mxu0
  %v685 = vadd.f32 %v419, %v684
  %v686 = vpop.f32.mrf.mxu0
  %v687 = vpop.f32.mrf.mxu0
  %v688 = vadd.f32 %v419, %v687
  %v689 = vpop.f32.mrf.mxu0
  %690 = vmatprep.mubr.bf16.mxu0 0
  %691 = vmatmul.mubr.bf16.gmra.mxu0 %v544
  %v692 = vpop.f32.mrf.mxu0
  %v693 = vadd.f32 %v419, %v692
  %v694 = vpop.f32.mrf.mxu0
  %v695 = vpop.f32.mrf.mxu0
  %v696 = vadd.f32 %v419, %v695
  %v697 = vpop.f32.mrf.mxu0
  %698 = vmatprep.mubr.bf16.mxu0 0
  %699 = vmatmul.mubr.bf16.gmra.mxu0 %v547
  %v700 = vpop.f32.mrf.mxu0
  %v701 = vadd.f32 %v419, %v700
  %v702 = vpop.f32.mrf.mxu0
  %v703 = vpop.f32.mrf.mxu0
  %v704 = vadd.f32 %v419, %v703
  %v705 = vpop.f32.mrf.mxu0
  %706 = vmatprep.mubr.bf16.mxu0 0
  %707 = vmatmul.mubr.bf16.gmra.mxu0 %v550
  %v708 = vpop.f32.mrf.mxu0
  %v709 = vadd.f32 %v419, %v708
  %v710 = vpop.f32.mrf.mxu0
  %v711 = vpop.f32.mrf.mxu0
  %v712 = vadd.f32 %v419, %v711
  %v713 = vpop.f32.mrf.mxu0
  %714 = vmatprep.mubr.bf16.mxu0 0
  %715 = vmatmul.mubr.bf16.gmra.mxu0 %v553
  %v716 = vpop.f32.mrf.mxu0
  %v717 = vadd.f32 %v419, %v716
  %v718 = vpop.f32.mrf.mxu0
  %v719 = vpop.f32.mrf.mxu0
  %v720 = vadd.f32 %v419, %v719
  %v721 = vpop.f32.mrf.mxu0
  %722 = vdwg.mxu0
  %v723 = vmax.f32 %v597, 0.0
  %v724 = vmax.f32 %v600, 0.0
  %v725 = vmax.f32 %v605, 0.0
  %v726 = vmax.f32 %v608, 0.0
  %v727 = vmax.f32 %v613, 0.0
  %v728 = vmax.f32 %v616, 0.0
  %v729 = vmax.f32 %v621, 0.0
  %v730 = vmax.f32 %v624, 0.0
  %v731 = vmax.f32 %v629, 0.0
  %v732 = vmax.f32 %v632, 0.0
  %v733 = vmax.f32 %v637, 0.0
  %v734 = vmax.f32 %v640, 0.0
  %v735 = vmax.f32 %v645, 0.0
  %v736 = vmax.f32 %v648, 0.0
  %v737 = vmax.f32 %v653, 0.0
  %v738 = vmax.f32 %v656, 0.0
  %v739 = vmax.f32 %v661, 0.0
  %v740 = vmax.f32 %v664, 0.0
  %v741 = vmax.f32 %v669, 0.0
  %v742 = vmax.f32 %v672, 0.0
  %v743 = vmax.f32 %v677, 0.0
  %v744 = vmax.f32 %v680, 0.0
  %v745 = vmax.f32 %v685, 0.0
  %v746 = vmax.f32 %v688, 0.0
  %v747 = vmax.f32 %v693, 0.0
  %v748 = vmax.f32 %v696, 0.0
  %v749 = vmax.f32 %v701, 0.0
  %v750 = vmax.f32 %v704, 0.0
  %v751 = vmax.f32 %v709, 0.0
  %v752 = vmax.f32 %v712, 0.0
  %v753 = vmax.f32 %v717, 0.0
  %v754 = vmax.f32 %v720, 0.0
  %v755 = vpack.c.bf16 %v724, %v723
  %v756 = vpack.c.bf16 %v726, %v725
  %v757 = vpack.c.bf16 %v728, %v727
  %v758 = vpack.c.bf16 %v730, %v729
  %v759 = vpack.c.bf16 %v732, %v731
  %v760 = vpack.c.bf16 %v734, %v733
  %v761 = vpack.c.bf16 %v736, %v735
  %v762 = vpack.c.bf16 %v738, %v737
  %v763 = vpack.c.bf16 %v740, %v739
  %v764 = vpack.c.bf16 %v742, %v741
  %v765 = vpack.c.bf16 %v744, %v743
  %v766 = vpack.c.bf16 %v746, %v745
  %v767 = vpack.c.bf16 %v748, %v747
  %v768 = vpack.c.bf16 %v750, %v749
  %v769 = vpack.c.bf16 %v752, %v751
  %v770 = vpack.c.bf16 %v754, %v753
  %v771 = vld [vmem:[%s4] sm:$0xf]
  %v772 = vld [vmem:[%s4 + $0x4] sm:$0xf]
  %v773 = vld [vmem:[%s5] sm:$0x1]
  %v775 = vlaneseq
  %v776 = vshrl.u32 %v775, 7
  %v777 = vsub.s32 0, %v776
  %v778 = vrot.slane %v773, %v777
  %v782 = vunpack.c.l.b16 %v771
  %v783 = vunpack.c.l.b16 %v772
  %v784 = vpack.c.b16 %v783, %v782
  %vm786 = vcmask 130048
  %v788 = vsel %vm786, %v755, 0
  %v791 = vsel %vm786, %v756, 0
  %v794 = vsel %vm786, %v757, 0
  %v797 = vsel %vm786, %v758, 0
  %v800 = vsel %vm786, %v759, 0
  %v803 = vsel %vm786, %v760, 0
  %v806 = vsel %vm786, %v761, 0
  %v809 = vsel %vm786, %v762, 0
  %v812 = vsel %vm786, %v763, 0
  %v815 = vsel %vm786, %v764, 0
  %v818 = vsel %vm786, %v765, 0
  %v821 = vsel %vm786, %v766, 0
  %v824 = vsel %vm786, %v767, 0
  %v827 = vsel %vm786, %v768, 0
  %v830 = vsel %vm786, %v769, 0
  %v833 = vsel %vm786, %v770, 0
  %835 = vmatprep.subr.bf16.mxu0 0
  %836 = vmatpush1.bf16.msra.mxu0 0
  %837 = vmatprep.subr.bf16.mxu0 0
  %838 = vmatpush1.bf16.msra.mxu0 0
  %839 = vmatprep.subr.bf16.mxu0 0
  %840 = vmatpush1.bf16.msra.mxu0 0
  %841 = vmatprep.subr.bf16.mxu0 0
  %842 = vmatpush1.bf16.msra.mxu0 0
  %843 = vmatprep.subr.bf16.mxu0 0
  %844 = vmatpush1.bf16.msra.mxu0 0
  %845 = vmatprep.subr.bf16.mxu0 0
  %846 = vmatpush1.bf16.msra.mxu0 0
  %847 = vmatprep.subr.bf16.mxu0 0
  %848 = vmatpush1.bf16.msra.mxu0 0
  %849 = vmatprep.subr.bf16.mxu0 0
  %850 = vmatpush1.bf16.msra.mxu0 %v784
  %851 = vmatprep.subr.bf16.mxu0 0
  %852 = vmatpush2.bf16.msra.mxu0 0
  %853 = vmatprep.subr.bf16.mxu0 0
  %854 = vmatpush2.bf16.msra.mxu0 0
  %855 = vmatprep.subr.bf16.mxu0 0
  %856 = vmatpush2.bf16.msra.mxu0 0
  %857 = vmatprep.subr.bf16.mxu0 0
  %858 = vmatpush2.bf16.msra.mxu0 0
  %859 = vmatprep.subr.bf16.mxu0 0
  %860 = vmatpush2.bf16.msra.mxu0 0
  %861 = vmatprep.subr.bf16.mxu0 0
  %862 = vmatpush2.bf16.msra.mxu0 0
  %863 = vmatprep.subr.bf16.mxu0 0
  %864 = vmatpush2.bf16.msra.mxu0 0
  %865 = vmatprep.subr.bf16.mxu0 0
  %866 = vmatpush2.bf16.msra.mxu0 0
  %867 = vmatprep.mubr.bf16.mxu0 0
  %868 = vmatmul.mubr.bf16.gmra.mxu0 %v788
  %v869 = vpop.f32.mrf.mxu0
  %v870 = vadd.f32 %v778, %v869
  %v871 = vpop.f32.mrf.mxu0
  %v872 = vpop.f32.mrf.mxu0
  %v873 = vadd.f32 %v778, %v872
  %v874 = vpop.f32.mrf.mxu0
  %875 = vmatprep.mubr.bf16.mxu0 0
  %876 = vmatmul.mubr.bf16.gmra.mxu0 %v791
  %v877 = vpop.f32.mrf.mxu0
  %v878 = vadd.f32 %v778, %v877
  %v879 = vpop.f32.mrf.mxu0
  %v880 = vpop.f32.mrf.mxu0
  %v881 = vadd.f32 %v778, %v880
  %v882 = vpop.f32.mrf.mxu0
  %883 = vmatprep.mubr.bf16.mxu0 0
  %884 = vmatmul.mubr.bf16.gmra.mxu0 %v794
  %v885 = vpop.f32.mrf.mxu0
  %v886 = vadd.f32 %v778, %v885
  %v887 = vpop.f32.mrf.mxu0
  %v888 = vpop.f32.mrf.mxu0
  %v889 = vadd.f32 %v778, %v888
  %v890 = vpop.f32.mrf.mxu0
  %891 = vmatprep.mubr.bf16.mxu0 0
  %892 = vmatmul.mubr.bf16.gmra.mxu0 %v797
  %v893 = vpop.f32.mrf.mxu0
  %v894 = vadd.f32 %v778, %v893
  %v895 = vpop.f32.mrf.mxu0
  %v896 = vpop.f32.mrf.mxu0
  %v897 = vadd.f32 %v778, %v896
  %v898 = vpop.f32.mrf.mxu0
  %899 = vmatprep.mubr.bf16.mxu0 0
  %900 = vmatmul.mubr.bf16.gmra.mxu0 %v800
  %v901 = vpop.f32.mrf.mxu0
  %v902 = vadd.f32 %v778, %v901
  %v903 = vpop.f32.mrf.mxu0
  %v904 = vpop.f32.mrf.mxu0
  %v905 = vadd.f32 %v778, %v904
  %v906 = vpop.f32.mrf.mxu0
  %907 = vmatprep.mubr.bf16.mxu0 0
  %908 = vmatmul.mubr.bf16.gmra.mxu0 %v803
  %v909 = vpop.f32.mrf.mxu0
  %v910 = vadd.f32 %v778, %v909
  %v911 = vpop.f32.mrf.mxu0
  %v912 = vpop.f32.mrf.mxu0
  %v913 = vadd.f32 %v778, %v912
  %v914 = vpop.f32.mrf.mxu0
  %915 = vmatprep.mubr.bf16.mxu0 0
  %916 = vmatmul.mubr.bf16.gmra.mxu0 %v806
  %v917 = vpop.f32.mrf.mxu0
  %v918 = vadd.f32 %v778, %v917
  %v919 = vpop.f32.mrf.mxu0
  %v920 = vpop.f32.mrf.mxu0
  %v921 = vadd.f32 %v778, %v920
  %v922 = vpop.f32.mrf.mxu0
  %923 = vmatprep.mubr.bf16.mxu0 0
  %924 = vmatmul.mubr.bf16.gmra.mxu0 %v809
  %v925 = vpop.f32.mrf.mxu0
  %v926 = vadd.f32 %v778, %v925
  %v927 = vpop.f32.mrf.mxu0
  %v928 = vpop.f32.mrf.mxu0
  %v929 = vadd.f32 %v778, %v928
  %v930 = vpop.f32.mrf.mxu0
  %931 = vmatprep.mubr.bf16.mxu0 0
  %932 = vmatmul.mubr.bf16.gmra.mxu0 %v812
  %v933 = vpop.f32.mrf.mxu0
  %v934 = vadd.f32 %v778, %v933
  %v935 = vpop.f32.mrf.mxu0
  %v936 = vpop.f32.mrf.mxu0
  %v937 = vadd.f32 %v778, %v936
  %v938 = vpop.f32.mrf.mxu0
  %939 = vmatprep.mubr.bf16.mxu0 0
  %940 = vmatmul.mubr.bf16.gmra.mxu0 %v815
  %v941 = vpop.f32.mrf.mxu0
  %v942 = vadd.f32 %v778, %v941
  %v943 = vpop.f32.mrf.mxu0
  %v944 = vpop.f32.mrf.mxu0
  %v945 = vadd.f32 %v778, %v944
  %v946 = vpop.f32.mrf.mxu0
  %947 = vmatprep.mubr.bf16.mxu0 0
  %948 = vmatmul.mubr.bf16.gmra.mxu0 %v818
  %v949 = vpop.f32.mrf.mxu0
  %v950 = vadd.f32 %v778, %v949
  %v951 = vpop.f32.mrf.mxu0
  %v952 = vpop.f32.mrf.mxu0
  %v953 = vadd.f32 %v778, %v952
  %v954 = vpop.f32.mrf.mxu0
  %955 = vmatprep.mubr.bf16.mxu0 0
  %956 = vmatmul.mubr.bf16.gmra.mxu0 %v821
  %v957 = vpop.f32.mrf.mxu0
  %v958 = vadd.f32 %v778, %v957
  %v959 = vpop.f32.mrf.mxu0
  %v960 = vpop.f32.mrf.mxu0
  %v961 = vadd.f32 %v778, %v960
  %v962 = vpop.f32.mrf.mxu0
  %963 = vmatprep.mubr.bf16.mxu0 0
  %964 = vmatmul.mubr.bf16.gmra.mxu0 %v824
  %v965 = vpop.f32.mrf.mxu0
  %v966 = vadd.f32 %v778, %v965
  %v967 = vpop.f32.mrf.mxu0
  %v968 = vpop.f32.mrf.mxu0
  %v969 = vadd.f32 %v778, %v968
  %v970 = vpop.f32.mrf.mxu0
  %971 = vmatprep.mubr.bf16.mxu0 0
  %972 = vmatmul.mubr.bf16.gmra.mxu0 %v827
  %v973 = vpop.f32.mrf.mxu0
  %v974 = vadd.f32 %v778, %v973
  %v975 = vpop.f32.mrf.mxu0
  %v976 = vpop.f32.mrf.mxu0
  %v977 = vadd.f32 %v778, %v976
  %v978 = vpop.f32.mrf.mxu0
  %979 = vmatprep.mubr.bf16.mxu0 0
  %980 = vmatmul.mubr.bf16.gmra.mxu0 %v830
  %v981 = vpop.f32.mrf.mxu0
  %v982 = vadd.f32 %v778, %v981
  %v983 = vpop.f32.mrf.mxu0
  %v984 = vpop.f32.mrf.mxu0
  %v985 = vadd.f32 %v778, %v984
  %v986 = vpop.f32.mrf.mxu0
  %987 = vmatprep.mubr.bf16.mxu0 0
  %988 = vmatmul.mubr.bf16.gmra.mxu0 %v833
  %v989 = vpop.f32.mrf.mxu0
  %v990 = vadd.f32 %v778, %v989
  %v991 = vpop.f32.mrf.mxu0
  %v992 = vpop.f32.mrf.mxu0
  %v993 = vadd.f32 %v778, %v992
  %v994 = vpop.f32.mrf.mxu0
  %995 = vdwg.mxu0
  %v996 = vmax.f32 %v870, 0.0
  %v997 = vmax.f32 %v873, 0.0
  %v998 = vmax.f32 %v878, 0.0
  %v999 = vmax.f32 %v881, 0.0
  %v1000 = vmax.f32 %v886, 0.0
  %v1001 = vmax.f32 %v889, 0.0
  %v1002 = vmax.f32 %v894, 0.0
  %v1003 = vmax.f32 %v897, 0.0
  %v1004 = vmax.f32 %v902, 0.0
  %v1005 = vmax.f32 %v905, 0.0
  %v1006 = vmax.f32 %v910, 0.0
  %v1007 = vmax.f32 %v913, 0.0
  %v1008 = vmax.f32 %v918, 0.0
  %v1009 = vmax.f32 %v921, 0.0
  %v1010 = vmax.f32 %v926, 0.0
  %v1011 = vmax.f32 %v929, 0.0
  %v1012 = vmax.f32 %v934, 0.0
  %v1013 = vmax.f32 %v937, 0.0
  %v1014 = vmax.f32 %v942, 0.0
  %v1015 = vmax.f32 %v945, 0.0
  %v1016 = vmax.f32 %v950, 0.0
  %v1017 = vmax.f32 %v953, 0.0
  %v1018 = vmax.f32 %v958, 0.0
  %v1019 = vmax.f32 %v961, 0.0
  %v1020 = vmax.f32 %v966, 0.0
  %v1021 = vmax.f32 %v969, 0.0
  %v1022 = vmax.f32 %v974, 0.0
  %v1023 = vmax.f32 %v977, 0.0
  %v1024 = vmax.f32 %v982, 0.0
  %v1025 = vmax.f32 %v985, 0.0
  %v1026 = vmax.f32 %v990, 0.0
  %v1027 = vmax.f32 %v993, 0.0
  %v1028 = vmax.f32 %v996, %v997
  %v1029 = vrot.slane %v1028, 4
  %v1030 = vmax.f32 %v1028, %v1029
  %v1031 = vrot.slane %v1030, 2
  %v1032 = vmax.f32 %v1030, %v1031
  %v1033 = vrot.slane %v1032, 1
  %v1034 = vmax.f32 %v1032, %v1033
  %v1035 = vmax.f32 %v998, %v999
  %v1036 = vrot.slane %v1035, 4
  %v1037 = vmax.f32 %v1035, %v1036
  %v1038 = vrot.slane %v1037, 2
  %v1039 = vmax.f32 %v1037, %v1038
  %v1040 = vrot.slane %v1039, 1
  %v1041 = vmax.f32 %v1039, %v1040
  %v1042 = vmax.f32 %v1000, %v1001
  %v1043 = vrot.slane %v1042, 4
  %v1044 = vmax.f32 %v1042, %v1043
  %v1045 = vrot.slane %v1044, 2
  %v1046 = vmax.f32 %v1044, %v1045
  %v1047 = vrot.slane %v1046, 1
  %v1048 = vmax.f32 %v1046, %v1047
  %v1049 = vmax.f32 %v1002, %v1003
  %v1050 = vrot.slane %v1049, 4
  %v1051 = vmax.f32 %v1049, %v1050
  %v1052 = vrot.slane %v1051, 2
  %v1053 = vmax.f32 %v1051, %v1052
  %v1054 = vrot.slane %v1053, 1
  %v1055 = vmax.f32 %v1053, %v1054
  %v1056 = vmax.f32 %v1004, %v1005
  %v1057 = vrot.slane %v1056, 4
  %v1058 = vmax.f32 %v1056, %v1057
  %v1059 = vrot.slane %v1058, 2
  %v1060 = vmax.f32 %v1058, %v1059
  %v1061 = vrot.slane %v1060, 1
  %v1062 = vmax.f32 %v1060, %v1061
  %v1063 = vmax.f32 %v1006, %v1007
  %v1064 = vrot.slane %v1063, 4
  %v1065 = vmax.f32 %v1063, %v1064
  %v1066 = vrot.slane %v1065, 2
  %v1067 = vmax.f32 %v1065, %v1066
  %v1068 = vrot.slane %v1067, 1
  %v1069 = vmax.f32 %v1067, %v1068
  %v1070 = vmax.f32 %v1008, %v1009
  %v1071 = vrot.slane %v1070, 4
  %v1072 = vmax.f32 %v1070, %v1071
  %v1073 = vrot.slane %v1072, 2
  %v1074 = vmax.f32 %v1072, %v1073
  %v1075 = vrot.slane %v1074, 1
  %v1076 = vmax.f32 %v1074, %v1075
  %v1077 = vmax.f32 %v1010, %v1011
  %v1078 = vrot.slane %v1077, 4
  %v1079 = vmax.f32 %v1077, %v1078
  %v1080 = vrot.slane %v1079, 2
  %v1081 = vmax.f32 %v1079, %v1080
  %v1082 = vrot.slane %v1081, 1
  %v1083 = vmax.f32 %v1081, %v1082
  %v1084 = vmax.f32 %v1012, %v1013
  %v1085 = vrot.slane %v1084, 4
  %v1086 = vmax.f32 %v1084, %v1085
  %v1087 = vrot.slane %v1086, 2
  %v1088 = vmax.f32 %v1086, %v1087
  %v1089 = vrot.slane %v1088, 1
  %v1090 = vmax.f32 %v1088, %v1089
  %v1091 = vmax.f32 %v1014, %v1015
  %v1092 = vrot.slane %v1091, 4
  %v1093 = vmax.f32 %v1091, %v1092
  %v1094 = vrot.slane %v1093, 2
  %v1095 = vmax.f32 %v1093, %v1094
  %v1096 = vrot.slane %v1095, 1
  %v1097 = vmax.f32 %v1095, %v1096
  %v1098 = vmax.f32 %v1016, %v1017
  %v1099 = vrot.slane %v1098, 4
  %v1100 = vmax.f32 %v1098, %v1099
  %v1101 = vrot.slane %v1100, 2
  %v1102 = vmax.f32 %v1100, %v1101
  %v1103 = vrot.slane %v1102, 1
  %v1104 = vmax.f32 %v1102, %v1103
  %v1105 = vmax.f32 %v1018, %v1019
  %v1106 = vrot.slane %v1105, 4
  %v1107 = vmax.f32 %v1105, %v1106
  %v1108 = vrot.slane %v1107, 2
  %v1109 = vmax.f32 %v1107, %v1108
  %v1110 = vrot.slane %v1109, 1
  %v1111 = vmax.f32 %v1109, %v1110
  %v1112 = vmax.f32 %v1020, %v1021
  %v1113 = vrot.slane %v1112, 4
  %v1114 = vmax.f32 %v1112, %v1113
  %v1115 = vrot.slane %v1114, 2
  %v1116 = vmax.f32 %v1114, %v1115
  %v1117 = vrot.slane %v1116, 1
  %v1118 = vmax.f32 %v1116, %v1117
  %v1119 = vmax.f32 %v1022, %v1023
  %v1120 = vrot.slane %v1119, 4
  %v1121 = vmax.f32 %v1119, %v1120
  %v1122 = vrot.slane %v1121, 2
  %v1123 = vmax.f32 %v1121, %v1122
  %v1124 = vrot.slane %v1123, 1
  %v1125 = vmax.f32 %v1123, %v1124
  %v1126 = vmax.f32 %v1024, %v1025
  %v1127 = vrot.slane %v1126, 4
  %v1128 = vmax.f32 %v1126, %v1127
  %v1129 = vrot.slane %v1128, 2
  %v1130 = vmax.f32 %v1128, %v1129
  %v1131 = vrot.slane %v1130, 1
  %v1132 = vmax.f32 %v1130, %v1131
  %v1133 = vmax.f32 %v1026, %v1027
  %v1134 = vrot.slane %v1133, 4
  %v1135 = vmax.f32 %v1133, %v1134
  %v1136 = vrot.slane %v1135, 2
  %v1137 = vmax.f32 %v1135, %v1136
  %v1138 = vrot.slane %v1137, 1
  %v1139 = vmax.f32 %v1137, %v1138
  %v1140 = vpack.c.bf16 %v1034, %v1034
  %v1141 = vpack.c.bf16 %v1041, %v1041
  %v1142 = vpack.c.bf16 %v1048, %v1048
  %v1143 = vpack.c.bf16 %v1055, %v1055
  %v1144 = vpack.c.bf16 %v1062, %v1062
  %v1145 = vpack.c.bf16 %v1069, %v1069
  %v1146 = vpack.c.bf16 %v1076, %v1076
  %v1147 = vpack.c.bf16 %v1083, %v1083
  %v1148 = vpack.c.bf16 %v1090, %v1090
  %v1149 = vpack.c.bf16 %v1097, %v1097
  %v1150 = vpack.c.bf16 %v1104, %v1104
  %v1151 = vpack.c.bf16 %v1111, %v1111
  %v1152 = vpack.c.bf16 %v1118, %v1118
  %v1153 = vpack.c.bf16 %v1125, %v1125
  %v1154 = vpack.c.bf16 %v1132, %v1132
  %v1155 = vpack.c.bf16 %v1139, %v1139
  %v1172 = vunpack.c.l.b16 %v1140
  %v1173 = vunpack.c.l.b16 %v1141
  %v1174 = vunpack.c.l.b16 %v1142
  %v1175 = vunpack.c.l.b16 %v1143
  %v1176 = vunpack.c.l.b16 %v1144
  %v1177 = vunpack.c.l.b16 %v1145
  %v1178 = vunpack.c.l.b16 %v1146
  %v1179 = vunpack.c.l.b16 %v1147
  %v1180 = vunpack.c.l.b16 %v1148
  %v1181 = vunpack.c.l.b16 %v1149
  %v1182 = vunpack.c.l.b16 %v1150
  %v1183 = vunpack.c.l.b16 %v1151
  %v1184 = vunpack.c.l.b16 %v1152
  %v1185 = vunpack.c.l.b16 %v1153
  %v1186 = vunpack.c.l.b16 %v1154
  %v1187 = vunpack.c.l.b16 %v1155
  %v1188 = vpack.c.b16 %v1172, %v1172
  %v1189 = vpack.c.b16 %v1173, %v1173
  %v1190 = vpack.c.b16 %v1174, %v1174
  %v1191 = vpack.c.b16 %v1175, %v1175
  %v1192 = vpack.c.b16 %v1176, %v1176
  %v1193 = vpack.c.b16 %v1177, %v1177
  %v1194 = vpack.c.b16 %v1178, %v1178
  %v1195 = vpack.c.b16 %v1179, %v1179
  %v1196 = vpack.c.b16 %v1180, %v1180
  %v1197 = vpack.c.b16 %v1181, %v1181
  %v1198 = vpack.c.b16 %v1182, %v1182
  %v1199 = vpack.c.b16 %v1183, %v1183
  %v1200 = vpack.c.b16 %v1184, %v1184
  %v1201 = vpack.c.b16 %v1185, %v1185
  %v1202 = vpack.c.b16 %v1186, %v1186
  %v1203 = vpack.c.b16 %v1187, %v1187
  %v1204 = vunpack.c.l.b16 %v1188
  %v1205 = vunpack.c.l.b16 %v1189
  %v1206 = vunpack.c.l.b16 %v1190
  %v1207 = vunpack.c.l.b16 %v1191
  %v1208 = vunpack.c.l.b16 %v1192
  %v1209 = vunpack.c.l.b16 %v1193
  %v1210 = vunpack.c.l.b16 %v1194
  %v1211 = vunpack.c.l.b16 %v1195
  %v1212 = vunpack.c.l.b16 %v1196
  %v1213 = vunpack.c.l.b16 %v1197
  %v1214 = vunpack.c.l.b16 %v1198
  %v1215 = vunpack.c.l.b16 %v1199
  %v1216 = vunpack.c.l.b16 %v1200
  %v1217 = vunpack.c.l.b16 %v1201
  %v1218 = vunpack.c.l.b16 %v1202
  %v1219 = vunpack.c.l.b16 %v1203
  %vm1220 = vcmask 1041409
  %v1221 = vsel %vm1220, %v1205, %v1204
  %vm1222 = vcmask 1042434
  %v1223 = vsel %vm1222, %v1206, %v1221
  %vm1224 = vcmask 1043459
  %v1225 = vsel %vm1224, %v1207, %v1223
  %vm1226 = vcmask 1044484
  %v1227 = vsel %vm1226, %v1208, %v1225
  %vm1228 = vcmask 1045509
  %v1229 = vsel %vm1228, %v1209, %v1227
  %vm1230 = vcmask 1046534
  %v1231 = vsel %vm1230, %v1210, %v1229
  %vm1232 = vcmask 1047559
  %v1233 = vsel %vm1232, %v1211, %v1231
  %v1234 = vsel %vm1220, %v1213, %v1212
  %v1235 = vsel %vm1222, %v1214, %v1234
  %v1236 = vsel %vm1224, %v1215, %v1235
  %v1237 = vsel %vm1226, %v1216, %v1236
  %v1238 = vsel %vm1228, %v1217, %v1237
  %v1239 = vsel %vm1230, %v1218, %v1238
  %v1240 = vsel %vm1232, %v1219, %v1239
  %v1241 = vpack.c.b16 %v1233, %v1233
  %v1242 = vpack.c.b16 %v1240, %v1240
  %1245 = vst [vmem:[%s6] sm:$0xf] %v1241
  %1246 = vst [vmem:[%s6 + $0x4] sm:$0xf] %v1242
  // Predicated region
  $region26: #{pointnet_sa_msg_forward.3} parent=0 // pred_check
    _
  $region27: #{pointnet_sa_msg_forward.3} parent=0 // pred_check_branch
    %1248 = sbr.rel (0) target = $region29
  $region28: #{pointnet_sa_msg_forward.3} parent=0 // pred_region
    _
  $region29: #{pointnet_sa_msg_forward.3} parent=0 // pred_fallthru
    _
  // Predicated region
  $region30: #{pointnet_sa_msg_forward.3} parent=0 // pred_check
    _
  $region31: #{pointnet_sa_msg_forward.3} parent=0 // pred_check_branch
    %1250 = sbr.rel (0) target = $region33
  $region32: #{pointnet_sa_msg_forward.3} parent=0 // pred_region
    _
  $region33: #{pointnet_sa_msg_forward.3} parent=0 // pred_fallthru
    _

// kernel: pointnet_sa_msg_forward.2
$region0: #{pointnet_sa_msg_forward.2}
  #allocation0 [shape = 'u32[]', space=smem, size = 0x4, offset = 0x4, fixed_abs, tag = 'smem constant byte address 0x4 - core index']
  #allocation1 [shape = 'u32[144,128]{1,0:T(1,128)}', space=vmem, size = 0x12000, scoped, tag = 'internal scratch']
  %s0 = inlined_call_operand.vmem [shape: bf16[128,9], index: 0, kind: input, shape index: {}]
  %s1 = inlined_call_operand.vmem [shape: bf16[16,9], index: 1, kind: input, shape index: {}]
  %s2 = inlined_call_operand.vmem [shape: bf16[9,16], index: 2, kind: input, shape index: {}]
  %s3 = inlined_call_operand.vmem [shape: f32[1,16], index: 3, kind: input, shape index: {}]
  %s4 = inlined_call_operand.vmem [shape: bf16[16,128], index: 4, kind: input, shape index: {}]
  %s5 = inlined_call_operand.vmem [shape: f32[1,128], index: 5, kind: input, shape index: {}]
  %s6 = inlined_call_operand.vmem [shape: bf16[16,128], index: 6, kind: output, shape index: {}]
  %s7 = sld [smem:[#allocation0]]
  $region34: #{pointnet_sa_msg_forward.2} parent=0
    _
  %s9 = ssub.s32 1, %s7
  %s10 = scalar_select 0, %s9, %s7
  // Predicated region
  $region2: #{pointnet_sa_msg_forward.2} parent=0 // pred_check
    _
  $region3: #{pointnet_sa_msg_forward.2} parent=0 // pred_check_branch
    %12 = sbr.rel (0) target = $region5
  $region4: #{pointnet_sa_msg_forward.2} parent=0 // pred_region
    _
  $region5: #{pointnet_sa_msg_forward.2} parent=0 // pred_fallthru
    _
  // Predicated region
  $region6: #{pointnet_sa_msg_forward.2} parent=0 // pred_check
    _
  $region7: #{pointnet_sa_msg_forward.2} parent=0 // pred_check_branch
    %14 = sbr.rel (0) target = $region9
  $region8: #{pointnet_sa_msg_forward.2} parent=0 // pred_region
    _
  $region9: #{pointnet_sa_msg_forward.2} parent=0 // pred_fallthru
    _
  // Predicated region
  $region10: #{pointnet_sa_msg_forward.2} parent=0 // pred_check
    _
  $region11: #{pointnet_sa_msg_forward.2} parent=0 // pred_check_branch
    %16 = sbr.rel (0) target = $region13
  $region12: #{pointnet_sa_msg_forward.2} parent=0 // pred_region
    _
  $region13: #{pointnet_sa_msg_forward.2} parent=0 // pred_fallthru
    _
  // Predicated region
  $region14: #{pointnet_sa_msg_forward.2} parent=0 // pred_check
    _
  $region15: #{pointnet_sa_msg_forward.2} parent=0 // pred_check_branch
    %18 = sbr.rel (0) target = $region17
  $region16: #{pointnet_sa_msg_forward.2} parent=0 // pred_region
    _
  $region17: #{pointnet_sa_msg_forward.2} parent=0 // pred_fallthru
    _
  // Predicated region
  $region18: #{pointnet_sa_msg_forward.2} parent=0 // pred_check
    _
  $region19: #{pointnet_sa_msg_forward.2} parent=0 // pred_check_branch
    %20 = sbr.rel (0) target = $region21
  $region20: #{pointnet_sa_msg_forward.2} parent=0 // pred_region
    _
  $region21: #{pointnet_sa_msg_forward.2} parent=0 // pred_fallthru
    _
  // Predicated region
  $region22: #{pointnet_sa_msg_forward.2} parent=0 // pred_check
    _
  $region23: #{pointnet_sa_msg_forward.2} parent=0 // pred_check_branch
    %22 = sbr.rel (0) target = $region25
  $region24: #{pointnet_sa_msg_forward.2} parent=0 // pred_region
    _
  $region25: #{pointnet_sa_msg_forward.2} parent=0 // pred_fallthru
    _
  %v24 = vld [vmem:[%s0] sm:$0xf]
  %v25 = vld [vmem:[%s0 + $0x4] sm:$0xf]
  %v26 = vld [vmem:[%s0 + $0x8] sm:$0xf]
  %v27 = vld [vmem:[%s0 + $0xc] sm:$0xf]
  %v28 = vld [vmem:[%s0 + $0x10] sm:$0xf]
  %v29 = vld [vmem:[%s0 + $0x14] sm:$0xf]
  %v30 = vld [vmem:[%s0 + $0x18] sm:$0xf]
  %v31 = vld [vmem:[%s0 + $0x1c] sm:$0xf]
  %v32 = vld [vmem:[%s0 + $0x20] sm:$0xf]
  %v33 = vld [vmem:[%s0 + $0x24] sm:$0xf]
  %v34 = vld [vmem:[%s0 + $0x28] sm:$0xf]
  %v35 = vld [vmem:[%s0 + $0x2c] sm:$0xf]
  %v36 = vld [vmem:[%s0 + $0x30] sm:$0xf]
  %v37 = vld [vmem:[%s0 + $0x34] sm:$0xf]
  %v38 = vld [vmem:[%s0 + $0x38] sm:$0xf]
  %v39 = vld [vmem:[%s0 + $0x3c] sm:$0xf]
  %v40 = vld [vmem:[%s1] sm:$0xf]
  %v41 = vld [vmem:[%s1 + $0x4] sm:$0xf]
  %v45 = vunpack.c.l.s4 1966171168
  %v46 = vunpack.c.0.s8 %v45
  %v47 = vlaneseq
  %v48 = vshrl.u32 %v47, 7
  %v49 = vsub.s32 %v46, %v48
  %v50 = vrot.slane %v40, %v49
  %v51 = vcombine.high %v50, %v50
  %v53 = vunpack.c.l.s4 1966171168
  %v54 = vunpack.c.0.s8 %v53
  %v55 = vlaneseq
  %v56 = vshrl.u32 %v55, 7
  %v57 = vsub.s32 %v54, %v56
  %v58 = vrot.slane %v50, %v57
  %v60 = vunpack.c.l.s4 1966171168
  %v61 = vunpack.c.0.s8 %v60
  %v62 = vlaneseq
  %v63 = vshrl.u32 %v62, 7
  %v64 = vsub.s32 %v61, %v63
  %v65 = vrot.slane %v51, %v64
  %v66 = vcombine.high %v58, %v58
  %v67 = vcombine.high %v65, %v65
  %v69 = vunpack.c.l.s4 1966171168
  %v70 = vunpack.c.0.s8 %v69
  %v71 = vlaneseq
  %v72 = vshrl.u32 %v71, 7
  %v73 = vsub.s32 %v70, %v72
  %v74 = vrot.slane %v41, %v73
  %v75 = vcombine.high %v74, %v74
  %v77 = vunpack.c.l.s4 1966171168
  %v78 = vunpack.c.0.s8 %v77
  %v79 = vlaneseq
  %v80 = vshrl.u32 %v79, 7
  %v81 = vsub.s32 %v78, %v80
  %v82 = vrot.slane %v74, %v81
  %v84 = vunpack.c.l.s4 1966171168
  %v85 = vunpack.c.0.s8 %v84
  %v86 = vlaneseq
  %v87 = vshrl.u32 %v86, 7
  %v88 = vsub.s32 %v85, %v87
  %v89 = vrot.slane %v75, %v88
  %v90 = vcombine.high %v82, %v82
  %v91 = vcombine.high %v89, %v89
  %v92 = vunpack.i.l.s16 %v58
  %v93 = vunpack.i.h.s16 %v58
  %v94 = vunpack.i.l.s16 %v65
  %v95 = vunpack.i.h.s16 %v65
  %v96 = vunpack.i.l.s16 %v66
  %v97 = vunpack.i.h.s16 %v66
  %v98 = vunpack.i.l.s16 %v67
  %v99 = vunpack.i.h.s16 %v67
  %v100 = vunpack.i.l.s16 %v82
  %v101 = vunpack.i.h.s16 %v82
  %v102 = vunpack.i.l.s16 %v89
  %v103 = vunpack.i.h.s16 %v89
  %v104 = vunpack.i.l.s16 %v90
  %v105 = vunpack.i.h.s16 %v90
  %v106 = vunpack.i.l.s16 %v91
  %v107 = vunpack.i.h.s16 %v91
  %v108 = vpack.i.b16 %v92, %v92
  %v109 = vpack.i.b16 %v93, %v93
  %v110 = vpack.i.b16 %v94, %v94
  %v111 = vpack.i.b16 %v95, %v95
  %v112 = vpack.i.b16 %v96, %v96
  %v113 = vpack.i.b16 %v97, %v97
  %v114 = vpack.i.b16 %v98, %v98
  %v115 = vpack.i.b16 %v99, %v99
  %v116 = vpack.i.b16 %v100, %v100
  %v117 = vpack.i.b16 %v101, %v101
  %v118 = vpack.i.b16 %v102, %v102
  %v119 = vpack.i.b16 %v103, %v103
  %v120 = vpack.i.b16 %v104, %v104
  %v121 = vpack.i.b16 %v105, %v105
  %v122 = vpack.i.b16 %v106, %v106
  %v123 = vpack.i.b16 %v107, %v107
  %v124 = vlaneseq
  %v125 = vshrl.u32 %v124, 7
  %v126 = vsub.s32 0, %v125
  %v127 = vrot.slane %v108, %v126
  %v128 = vlaneseq
  %v129 = vshrl.u32 %v128, 7
  %v130 = vsub.s32 0, %v129
  %v131 = vrot.slane %v109, %v130
  %v132 = vlaneseq
  %v133 = vshrl.u32 %v132, 7
  %v134 = vsub.s32 0, %v133
  %v135 = vrot.slane %v110, %v134
  %v136 = vlaneseq
  %v137 = vshrl.u32 %v136, 7
  %v138 = vsub.s32 0, %v137
  %v139 = vrot.slane %v111, %v138
  %v140 = vlaneseq
  %v141 = vshrl.u32 %v140, 7
  %v142 = vsub.s32 0, %v141
  %v143 = vrot.slane %v112, %v142
  %v144 = vlaneseq
  %v145 = vshrl.u32 %v144, 7
  %v146 = vsub.s32 0, %v145
  %v147 = vrot.slane %v113, %v146
  %v148 = vlaneseq
  %v149 = vshrl.u32 %v148, 7
  %v150 = vsub.s32 0, %v149
  %v151 = vrot.slane %v114, %v150
  %v152 = vlaneseq
  %v153 = vshrl.u32 %v152, 7
  %v154 = vsub.s32 0, %v153
  %v155 = vrot.slane %v115, %v154
  %v156 = vlaneseq
  %v157 = vshrl.u32 %v156, 7
  %v158 = vsub.s32 0, %v157
  %v159 = vrot.slane %v116, %v158
  %v160 = vlaneseq
  %v161 = vshrl.u32 %v160, 7
  %v162 = vsub.s32 0, %v161
  %v163 = vrot.slane %v117, %v162
  %v164 = vlaneseq
  %v165 = vshrl.u32 %v164, 7
  %v166 = vsub.s32 0, %v165
  %v167 = vrot.slane %v118, %v166
  %v168 = vlaneseq
  %v169 = vshrl.u32 %v168, 7
  %v170 = vsub.s32 0, %v169
  %v171 = vrot.slane %v119, %v170
  %v172 = vlaneseq
  %v173 = vshrl.u32 %v172, 7
  %v174 = vsub.s32 0, %v173
  %v175 = vrot.slane %v120, %v174
  %v176 = vlaneseq
  %v177 = vshrl.u32 %v176, 7
  %v178 = vsub.s32 0, %v177
  %v179 = vrot.slane %v121, %v178
  %v180 = vlaneseq
  %v181 = vshrl.u32 %v180, 7
  %v182 = vsub.s32 0, %v181
  %v183 = vrot.slane %v122, %v182
  %v184 = vlaneseq
  %v185 = vshrl.u32 %v184, 7
  %v186 = vsub.s32 0, %v185
  %v187 = vrot.slane %v123, %v186
  %v189 = vpack.i.b16 %v127, %v127
  %v191 = vlaneseq
  %v192 = vshrl.u32 %v191, 7
  %v193 = vsub.s32 0, %v192
  %v194 = vrot.slane %v189, %v193
  %v196 = vpack.i.b16 %v131, %v131
  %v198 = vlaneseq
  %v199 = vshrl.u32 %v198, 7
  %v200 = vsub.s32 0, %v199
  %v201 = vrot.slane %v196, %v200
  %v203 = vpack.i.b16 %v135, %v135
  %v205 = vlaneseq
  %v206 = vshrl.u32 %v205, 7
  %v207 = vsub.s32 0, %v206
  %v208 = vrot.slane %v203, %v207
  %v210 = vpack.i.b16 %v139, %v139
  %v212 = vlaneseq
  %v213 = vshrl.u32 %v212, 7
  %v214 = vsub.s32 0, %v213
  %v215 = vrot.slane %v210, %v214
  %v217 = vpack.i.b16 %v143, %v143
  %v219 = vlaneseq
  %v220 = vshrl.u32 %v219, 7
  %v221 = vsub.s32 0, %v220
  %v222 = vrot.slane %v217, %v221
  %v224 = vpack.i.b16 %v147, %v147
  %v226 = vlaneseq
  %v227 = vshrl.u32 %v226, 7
  %v228 = vsub.s32 0, %v227
  %v229 = vrot.slane %v224, %v228
  %v231 = vpack.i.b16 %v151, %v151
  %v233 = vlaneseq
  %v234 = vshrl.u32 %v233, 7
  %v235 = vsub.s32 0, %v234
  %v236 = vrot.slane %v231, %v235
  %v238 = vpack.i.b16 %v155, %v155
  %v240 = vlaneseq
  %v241 = vshrl.u32 %v240, 7
  %v242 = vsub.s32 0, %v241
  %v243 = vrot.slane %v238, %v242
  %v245 = vpack.i.b16 %v159, %v159
  %v247 = vlaneseq
  %v248 = vshrl.u32 %v247, 7
  %v249 = vsub.s32 0, %v248
  %v250 = vrot.slane %v245, %v249
  %v252 = vpack.i.b16 %v163, %v163
  %v254 = vlaneseq
  %v255 = vshrl.u32 %v254, 7
  %v256 = vsub.s32 0, %v255
  %v257 = vrot.slane %v252, %v256
  %v259 = vpack.i.b16 %v167, %v167
  %v261 = vlaneseq
  %v262 = vshrl.u32 %v261, 7
  %v263 = vsub.s32 0, %v262
  %v264 = vrot.slane %v259, %v263
  %v266 = vpack.i.b16 %v171, %v171
  %v268 = vlaneseq
  %v269 = vshrl.u32 %v268, 7
  %v270 = vsub.s32 0, %v269
  %v271 = vrot.slane %v266, %v270
  %v273 = vpack.i.b16 %v175, %v175
  %v275 = vlaneseq
  %v276 = vshrl.u32 %v275, 7
  %v277 = vsub.s32 0, %v276
  %v278 = vrot.slane %v273, %v277
  %v280 = vpack.i.b16 %v179, %v179
  %v282 = vlaneseq
  %v283 = vshrl.u32 %v282, 7
  %v284 = vsub.s32 0, %v283
  %v285 = vrot.slane %v280, %v284
  %v287 = vpack.i.b16 %v183, %v183
  %v289 = vlaneseq
  %v290 = vshrl.u32 %v289, 7
  %v291 = vsub.s32 0, %v290
  %v292 = vrot.slane %v287, %v291
  %v294 = vpack.i.b16 %v187, %v187
  %v296 = vlaneseq
  %v297 = vshrl.u32 %v296, 7
  %v298 = vsub.s32 0, %v297
  %v299 = vrot.slane %v294, %v298
  %v300 = vsub.bf16 %v24, %v194
  %v301 = vsub.bf16 %v25, %v201
  %v302 = vsub.bf16 %v26, %v208
  %v303 = vsub.bf16 %v27, %v215
  %v304 = vsub.bf16 %v28, %v222
  %v305 = vsub.bf16 %v29, %v229
  %v306 = vsub.bf16 %v30, %v236
  %v307 = vsub.bf16 %v31, %v243
  %v308 = vsub.bf16 %v32, %v250
  %v309 = vsub.bf16 %v33, %v257
  %v310 = vsub.bf16 %v34, %v264
  %v311 = vsub.bf16 %v35, %v271
  %v312 = vsub.bf16 %v36, %v278
  %v313 = vsub.bf16 %v37, %v285
  %v314 = vsub.bf16 %v38, %v292
  %v315 = vsub.bf16 %v39, %v299
  %v316 = vld [vmem:[%s2] sm:$0xf]
  %v317 = vld [vmem:[%s2 + $0x4] sm:$0x1]
  %v318 = vld [vmem:[%s3] sm:$0x1]
  %v320 = vlaneseq
  %v321 = vshrl.u32 %v320, 7
  %v322 = vsub.s32 0, %v321
  %v323 = vrot.slane %v318, %v322
  %v341 = vunpack.c.l.b16 %v300
  %v342 = vunpack.c.l.b16 %v301
  %v343 = vunpack.c.l.b16 %v302
  %v344 = vunpack.c.l.b16 %v303
  %v345 = vunpack.c.l.b16 %v304
  %v346 = vunpack.c.l.b16 %v305
  %v347 = vunpack.c.l.b16 %v306
  %v348 = vunpack.c.l.b16 %v307
  %v349 = vunpack.c.l.b16 %v308
  %v350 = vunpack.c.l.b16 %v309
  %v351 = vunpack.c.l.b16 %v310
  %v352 = vunpack.c.l.b16 %v311
  %v353 = vunpack.c.l.b16 %v312
  %v354 = vunpack.c.l.b16 %v313
  %v355 = vunpack.c.l.b16 %v314
  %v356 = vunpack.c.l.b16 %v315
  %v357 = vpack.c.b16 %v342, %v341
  %v358 = vpack.c.b16 %v344, %v343
  %v359 = vpack.c.b16 %v346, %v345
  %v360 = vpack.c.b16 %v348, %v347
  %v361 = vpack.c.b16 %v350, %v349
  %v362 = vpack.c.b16 %v352, %v351
  %v363 = vpack.c.b16 %v354, %v353
  %v364 = vpack.c.b16 %v356, %v355
  %v367 = vunpack.c.l.b16 %v316
  %v368 = vunpack.c.l.b16 %v317
  %v369 = vpack.c.b16 %v368, %v367
  %vm370 = vcmask 72704
  %v372 = vsel %vm370, %v357, 0
  %v375 = vsel %vm370, %v358, 0
  %v378 = vsel %vm370, %v359, 0
  %v381 = vsel %vm370, %v360, 0
  %v384 = vsel %vm370, %v361, 0
  %v387 = vsel %vm370, %v362, 0
  %v390 = vsel %vm370, %v363, 0
  %v393 = vsel %vm370, %v364, 0
  %vm395 = vcmask 1043456
  %vm396 = vcmask 1044480
  %v397 = vsel %vm395, 4294967295, 65535
  %v398 = vsel %vm396, %v397, 0
  %v400 = vand.u32 %v369, %v398
  %402 = vmatprep.subr.bf16.mxu0 0
  %403 = vmatpush1.bf16.msra.mxu0 0
  %404 = vmatprep.subr.bf16.mxu0 0
  %405 = vmatpush1.bf16.msra.mxu0 0
  %406 = vmatprep.subr.bf16.mxu0 0
  %407 = vmatpush1.bf16.msra.mxu0 0
  %408 = vmatprep.subr.bf16.mxu0 0
  %409 = vmatpush1.bf16.msra.mxu0 0
  %410 = vmatprep.subr.bf16.mxu0 0
  %411 = vmatpush1.bf16.msra.mxu0 0
  %412 = vmatprep.subr.bf16.mxu0 0
  %413 = vmatpush1.bf16.msra.mxu0 0
  %414 = vmatprep.subr.bf16.mxu0 0
  %415 = vmatpush1.bf16.msra.mxu0 0
  %416 = vmatprep.subr.bf16.mxu0 0
  %417 = vmatpush1.bf16.msra.mxu0 %v400
  %418 = vmatprep.subr.bf16.mxu0 0
  %419 = vmatpush2.bf16.msra.mxu0 0
  %420 = vmatprep.subr.bf16.mxu0 0
  %421 = vmatpush2.bf16.msra.mxu0 0
  %422 = vmatprep.subr.bf16.mxu0 0
  %423 = vmatpush2.bf16.msra.mxu0 0
  %424 = vmatprep.subr.bf16.mxu0 0
  %425 = vmatpush2.bf16.msra.mxu0 0
  %426 = vmatprep.subr.bf16.mxu0 0
  %427 = vmatpush2.bf16.msra.mxu0 0
  %428 = vmatprep.subr.bf16.mxu0 0
  %429 = vmatpush2.bf16.msra.mxu0 0
  %430 = vmatprep.subr.bf16.mxu0 0
  %431 = vmatpush2.bf16.msra.mxu0 0
  %432 = vmatprep.subr.bf16.mxu0 0
  %433 = vmatpush2.bf16.msra.mxu0 0
  %434 = vmatprep.mubr.bf16.mxu0 0
  %435 = vmatmul.mubr.bf16.gmra.mxu0 %v372
  %v436 = vpop.f32.mrf.mxu0
  %v437 = vadd.f32 %v323, %v436
  %v438 = vpop.f32.mrf.mxu0
  %v439 = vpop.f32.mrf.mxu0
  %v440 = vadd.f32 %v323, %v439
  %v441 = vpop.f32.mrf.mxu0
  %442 = vmatprep.mubr.bf16.mxu0 0
  %443 = vmatmul.mubr.bf16.gmra.mxu0 %v375
  %v444 = vpop.f32.mrf.mxu0
  %v445 = vadd.f32 %v323, %v444
  %v446 = vpop.f32.mrf.mxu0
  %v447 = vpop.f32.mrf.mxu0
  %v448 = vadd.f32 %v323, %v447
  %v449 = vpop.f32.mrf.mxu0
  %450 = vmatprep.mubr.bf16.mxu0 0
  %451 = vmatmul.mubr.bf16.gmra.mxu0 %v378
  %v452 = vpop.f32.mrf.mxu0
  %v453 = vadd.f32 %v323, %v452
  %v454 = vpop.f32.mrf.mxu0
  %v455 = vpop.f32.mrf.mxu0
  %v456 = vadd.f32 %v323, %v455
  %v457 = vpop.f32.mrf.mxu0
  %458 = vmatprep.mubr.bf16.mxu0 0
  %459 = vmatmul.mubr.bf16.gmra.mxu0 %v381
  %v460 = vpop.f32.mrf.mxu0
  %v461 = vadd.f32 %v323, %v460
  %v462 = vpop.f32.mrf.mxu0
  %v463 = vpop.f32.mrf.mxu0
  %v464 = vadd.f32 %v323, %v463
  %v465 = vpop.f32.mrf.mxu0
  %466 = vmatprep.mubr.bf16.mxu0 0
  %467 = vmatmul.mubr.bf16.gmra.mxu0 %v384
  %v468 = vpop.f32.mrf.mxu0
  %v469 = vadd.f32 %v323, %v468
  %v470 = vpop.f32.mrf.mxu0
  %v471 = vpop.f32.mrf.mxu0
  %v472 = vadd.f32 %v323, %v471
  %v473 = vpop.f32.mrf.mxu0
  %474 = vmatprep.mubr.bf16.mxu0 0
  %475 = vmatmul.mubr.bf16.gmra.mxu0 %v387
  %v476 = vpop.f32.mrf.mxu0
  %v477 = vadd.f32 %v323, %v476
  %v478 = vpop.f32.mrf.mxu0
  %v479 = vpop.f32.mrf.mxu0
  %v480 = vadd.f32 %v323, %v479
  %v481 = vpop.f32.mrf.mxu0
  %482 = vmatprep.mubr.bf16.mxu0 0
  %483 = vmatmul.mubr.bf16.gmra.mxu0 %v390
  %v484 = vpop.f32.mrf.mxu0
  %v485 = vadd.f32 %v323, %v484
  %v486 = vpop.f32.mrf.mxu0
  %v487 = vpop.f32.mrf.mxu0
  %v488 = vadd.f32 %v323, %v487
  %v489 = vpop.f32.mrf.mxu0
  %490 = vmatprep.mubr.bf16.mxu0 0
  %491 = vmatmul.mubr.bf16.gmra.mxu0 %v393
  %v492 = vpop.f32.mrf.mxu0
  %v493 = vadd.f32 %v323, %v492
  %v494 = vpop.f32.mrf.mxu0
  %v495 = vpop.f32.mrf.mxu0
  %v496 = vadd.f32 %v323, %v495
  %v497 = vpop.f32.mrf.mxu0
  %498 = vdwg.mxu0
  %v499 = vmax.f32 %v437, 0.0
  %v500 = vmax.f32 %v440, 0.0
  %v501 = vmax.f32 %v445, 0.0
  %v502 = vmax.f32 %v448, 0.0
  %v503 = vmax.f32 %v453, 0.0
  %v504 = vmax.f32 %v456, 0.0
  %v505 = vmax.f32 %v461, 0.0
  %v506 = vmax.f32 %v464, 0.0
  %v507 = vmax.f32 %v469, 0.0
  %v508 = vmax.f32 %v472, 0.0
  %v509 = vmax.f32 %v477, 0.0
  %v510 = vmax.f32 %v480, 0.0
  %v511 = vmax.f32 %v485, 0.0
  %v512 = vmax.f32 %v488, 0.0
  %v513 = vmax.f32 %v493, 0.0
  %v514 = vmax.f32 %v496, 0.0
  %v515 = vpack.c.bf16 %v500, %v499
  %v516 = vpack.c.bf16 %v502, %v501
  %v517 = vpack.c.bf16 %v504, %v503
  %v518 = vpack.c.bf16 %v506, %v505
  %v519 = vpack.c.bf16 %v508, %v507
  %v520 = vpack.c.bf16 %v510, %v509
  %v521 = vpack.c.bf16 %v512, %v511
  %v522 = vpack.c.bf16 %v514, %v513
  %v523 = vld [vmem:[%s4] sm:$0xf]
  %v524 = vld [vmem:[%s4 + $0x4] sm:$0xf]
  %v525 = vld [vmem:[%s5] sm:$0x1]
  %v527 = vlaneseq
  %v528 = vshrl.u32 %v527, 7
  %v529 = vsub.s32 0, %v528
  %v530 = vrot.slane %v525, %v529
  %v534 = vunpack.c.l.b16 %v523
  %v535 = vunpack.c.l.b16 %v524
  %v536 = vpack.c.b16 %v535, %v534
  %vm538 = vcmask 130048
  %v540 = vsel %vm538, %v515, 0
  %v543 = vsel %vm538, %v516, 0
  %v546 = vsel %vm538, %v517, 0
  %v549 = vsel %vm538, %v518, 0
  %v552 = vsel %vm538, %v519, 0
  %v555 = vsel %vm538, %v520, 0
  %v558 = vsel %vm538, %v521, 0
  %v561 = vsel %vm538, %v522, 0
  %563 = vmatprep.subr.bf16.mxu0 0
  %564 = vmatpush1.bf16.msra.mxu0 0
  %565 = vmatprep.subr.bf16.mxu0 0
  %566 = vmatpush1.bf16.msra.mxu0 0
  %567 = vmatprep.subr.bf16.mxu0 0
  %568 = vmatpush1.bf16.msra.mxu0 0
  %569 = vmatprep.subr.bf16.mxu0 0
  %570 = vmatpush1.bf16.msra.mxu0 0
  %571 = vmatprep.subr.bf16.mxu0 0
  %572 = vmatpush1.bf16.msra.mxu0 0
  %573 = vmatprep.subr.bf16.mxu0 0
  %574 = vmatpush1.bf16.msra.mxu0 0
  %575 = vmatprep.subr.bf16.mxu0 0
  %576 = vmatpush1.bf16.msra.mxu0 0
  %577 = vmatprep.subr.bf16.mxu0 0
  %578 = vmatpush1.bf16.msra.mxu0 %v536
  %579 = vmatprep.subr.bf16.mxu0 0
  %580 = vmatpush2.bf16.msra.mxu0 0
  %581 = vmatprep.subr.bf16.mxu0 0
  %582 = vmatpush2.bf16.msra.mxu0 0
  %583 = vmatprep.subr.bf16.mxu0 0
  %584 = vmatpush2.bf16.msra.mxu0 0
  %585 = vmatprep.subr.bf16.mxu0 0
  %586 = vmatpush2.bf16.msra.mxu0 0
  %587 = vmatprep.subr.bf16.mxu0 0
  %588 = vmatpush2.bf16.msra.mxu0 0
  %589 = vmatprep.subr.bf16.mxu0 0
  %590 = vmatpush2.bf16.msra.mxu0 0
  %591 = vmatprep.subr.bf16.mxu0 0
  %592 = vmatpush2.bf16.msra.mxu0 0
  %593 = vmatprep.subr.bf16.mxu0 0
  %594 = vmatpush2.bf16.msra.mxu0 0
  %595 = vmatprep.mubr.bf16.mxu0 0
  %596 = vmatmul.mubr.bf16.gmra.mxu0 %v540
  %v597 = vpop.f32.mrf.mxu0
  %v598 = vadd.f32 %v530, %v597
  %v599 = vpop.f32.mrf.mxu0
  %v600 = vpop.f32.mrf.mxu0
  %v601 = vadd.f32 %v530, %v600
  %v602 = vpop.f32.mrf.mxu0
  %603 = vmatprep.mubr.bf16.mxu0 0
  %604 = vmatmul.mubr.bf16.gmra.mxu0 %v543
  %v605 = vpop.f32.mrf.mxu0
  %v606 = vadd.f32 %v530, %v605
  %v607 = vpop.f32.mrf.mxu0
  %v608 = vpop.f32.mrf.mxu0
  %v609 = vadd.f32 %v530, %v608
  %v610 = vpop.f32.mrf.mxu0
  %611 = vmatprep.mubr.bf16.mxu0 0
  %612 = vmatmul.mubr.bf16.gmra.mxu0 %v546
  %v613 = vpop.f32.mrf.mxu0
  %v614 = vadd.f32 %v530, %v613
  %v615 = vpop.f32.mrf.mxu0
  %v616 = vpop.f32.mrf.mxu0
  %v617 = vadd.f32 %v530, %v616
  %v618 = vpop.f32.mrf.mxu0
  %619 = vmatprep.mubr.bf16.mxu0 0
  %620 = vmatmul.mubr.bf16.gmra.mxu0 %v549
  %v621 = vpop.f32.mrf.mxu0
  %v622 = vadd.f32 %v530, %v621
  %v623 = vpop.f32.mrf.mxu0
  %v624 = vpop.f32.mrf.mxu0
  %v625 = vadd.f32 %v530, %v624
  %v626 = vpop.f32.mrf.mxu0
  %627 = vmatprep.mubr.bf16.mxu0 0
  %628 = vmatmul.mubr.bf16.gmra.mxu0 %v552
  %v629 = vpop.f32.mrf.mxu0
  %v630 = vadd.f32 %v530, %v629
  %v631 = vpop.f32.mrf.mxu0
  %v632 = vpop.f32.mrf.mxu0
  %v633 = vadd.f32 %v530, %v632
  %v634 = vpop.f32.mrf.mxu0
  %635 = vmatprep.mubr.bf16.mxu0 0
  %636 = vmatmul.mubr.bf16.gmra.mxu0 %v555
  %v637 = vpop.f32.mrf.mxu0
  %v638 = vadd.f32 %v530, %v637
  %v639 = vpop.f32.mrf.mxu0
  %v640 = vpop.f32.mrf.mxu0
  %v641 = vadd.f32 %v530, %v640
  %v642 = vpop.f32.mrf.mxu0
  %643 = vmatprep.mubr.bf16.mxu0 0
  %644 = vmatmul.mubr.bf16.gmra.mxu0 %v558
  %v645 = vpop.f32.mrf.mxu0
  %v646 = vadd.f32 %v530, %v645
  %v647 = vpop.f32.mrf.mxu0
  %v648 = vpop.f32.mrf.mxu0
  %v649 = vadd.f32 %v530, %v648
  %v650 = vpop.f32.mrf.mxu0
  %651 = vmatprep.mubr.bf16.mxu0 0
  %652 = vmatmul.mubr.bf16.gmra.mxu0 %v561
  %v653 = vpop.f32.mrf.mxu0
  %v654 = vadd.f32 %v530, %v653
  %v655 = vpop.f32.mrf.mxu0
  %v656 = vpop.f32.mrf.mxu0
  %v657 = vadd.f32 %v530, %v656
  %v658 = vpop.f32.mrf.mxu0
  %659 = vdwg.mxu0
  %v660 = vmax.f32 %v598, 0.0
  %v661 = vmax.f32 %v601, 0.0
  %v662 = vmax.f32 %v606, 0.0
  %v663 = vmax.f32 %v609, 0.0
  %v664 = vmax.f32 %v614, 0.0
  %v665 = vmax.f32 %v617, 0.0
  %v666 = vmax.f32 %v622, 0.0
  %v667 = vmax.f32 %v625, 0.0
  %v668 = vmax.f32 %v630, 0.0
  %v669 = vmax.f32 %v633, 0.0
  %v670 = vmax.f32 %v638, 0.0
  %v671 = vmax.f32 %v641, 0.0
  %v672 = vmax.f32 %v646, 0.0
  %v673 = vmax.f32 %v649, 0.0
  %v674 = vmax.f32 %v654, 0.0
  %v675 = vmax.f32 %v657, 0.0
  %v676 = vrot.slane %v660, 4
  %v677 = vmax.f32 %v660, %v676
  %v678 = vrot.slane %v677, 2
  %v679 = vmax.f32 %v677, %v678
  %v680 = vrot.slane %v679, 1
  %v681 = vmax.f32 %v679, %v680
  %v682 = vrot.slane %v661, 4
  %v683 = vmax.f32 %v661, %v682
  %v684 = vrot.slane %v683, 2
  %v685 = vmax.f32 %v683, %v684
  %v686 = vrot.slane %v685, 1
  %v687 = vmax.f32 %v685, %v686
  %v688 = vrot.slane %v662, 4
  %v689 = vmax.f32 %v662, %v688
  %v690 = vrot.slane %v689, 2
  %v691 = vmax.f32 %v689, %v690
  %v692 = vrot.slane %v691, 1
  %v693 = vmax.f32 %v691, %v692
  %v694 = vrot.slane %v663, 4
  %v695 = vmax.f32 %v663, %v694
  %v696 = vrot.slane %v695, 2
  %v697 = vmax.f32 %v695, %v696
  %v698 = vrot.slane %v697, 1
  %v699 = vmax.f32 %v697, %v698
  %v700 = vrot.slane %v664, 4
  %v701 = vmax.f32 %v664, %v700
  %v702 = vrot.slane %v701, 2
  %v703 = vmax.f32 %v701, %v702
  %v704 = vrot.slane %v703, 1
  %v705 = vmax.f32 %v703, %v704
  %v706 = vrot.slane %v665, 4
  %v707 = vmax.f32 %v665, %v706
  %v708 = vrot.slane %v707, 2
  %v709 = vmax.f32 %v707, %v708
  %v710 = vrot.slane %v709, 1
  %v711 = vmax.f32 %v709, %v710
  %v712 = vrot.slane %v666, 4
  %v713 = vmax.f32 %v666, %v712
  %v714 = vrot.slane %v713, 2
  %v715 = vmax.f32 %v713, %v714
  %v716 = vrot.slane %v715, 1
  %v717 = vmax.f32 %v715, %v716
  %v718 = vrot.slane %v667, 4
  %v719 = vmax.f32 %v667, %v718
  %v720 = vrot.slane %v719, 2
  %v721 = vmax.f32 %v719, %v720
  %v722 = vrot.slane %v721, 1
  %v723 = vmax.f32 %v721, %v722
  %v724 = vrot.slane %v668, 4
  %v725 = vmax.f32 %v668, %v724
  %v726 = vrot.slane %v725, 2
  %v727 = vmax.f32 %v725, %v726
  %v728 = vrot.slane %v727, 1
  %v729 = vmax.f32 %v727, %v728
  %v730 = vrot.slane %v669, 4
  %v731 = vmax.f32 %v669, %v730
  %v732 = vrot.slane %v731, 2
  %v733 = vmax.f32 %v731, %v732
  %v734 = vrot.slane %v733, 1
  %v735 = vmax.f32 %v733, %v734
  %v736 = vrot.slane %v670, 4
  %v737 = vmax.f32 %v670, %v736
  %v738 = vrot.slane %v737, 2
  %v739 = vmax.f32 %v737, %v738
  %v740 = vrot.slane %v739, 1
  %v741 = vmax.f32 %v739, %v740
  %v742 = vrot.slane %v671, 4
  %v743 = vmax.f32 %v671, %v742
  %v744 = vrot.slane %v743, 2
  %v745 = vmax.f32 %v743, %v744
  %v746 = vrot.slane %v745, 1
  %v747 = vmax.f32 %v745, %v746
  %v748 = vrot.slane %v672, 4
  %v749 = vmax.f32 %v672, %v748
  %v750 = vrot.slane %v749, 2
  %v751 = vmax.f32 %v749, %v750
  %v752 = vrot.slane %v751, 1
  %v753 = vmax.f32 %v751, %v752
  %v754 = vrot.slane %v673, 4
  %v755 = vmax.f32 %v673, %v754
  %v756 = vrot.slane %v755, 2
  %v757 = vmax.f32 %v755, %v756
  %v758 = vrot.slane %v757, 1
  %v759 = vmax.f32 %v757, %v758
  %v760 = vrot.slane %v674, 4
  %v761 = vmax.f32 %v674, %v760
  %v762 = vrot.slane %v761, 2
  %v763 = vmax.f32 %v761, %v762
  %v764 = vrot.slane %v763, 1
  %v765 = vmax.f32 %v763, %v764
  %v766 = vrot.slane %v675, 4
  %v767 = vmax.f32 %v675, %v766
  %v768 = vrot.slane %v767, 2
  %v769 = vmax.f32 %v767, %v768
  %v770 = vrot.slane %v769, 1
  %v771 = vmax.f32 %v769, %v770
  %v772 = vpack.c.bf16 %v681, %v681
  %v773 = vpack.c.bf16 %v687, %v687
  %v774 = vpack.c.bf16 %v693, %v693
  %v775 = vpack.c.bf16 %v699, %v699
  %v776 = vpack.c.bf16 %v705, %v705
  %v777 = vpack.c.bf16 %v711, %v711
  %v778 = vpack.c.bf16 %v717, %v717
  %v779 = vpack.c.bf16 %v723, %v723
  %v780 = vpack.c.bf16 %v729, %v729
  %v781 = vpack.c.bf16 %v735, %v735
  %v782 = vpack.c.bf16 %v741, %v741
  %v783 = vpack.c.bf16 %v747, %v747
  %v784 = vpack.c.bf16 %v753, %v753
  %v785 = vpack.c.bf16 %v759, %v759
  %v786 = vpack.c.bf16 %v765, %v765
  %v787 = vpack.c.bf16 %v771, %v771
  %v804 = vunpack.c.l.b16 %v772
  %v805 = vunpack.c.l.b16 %v773
  %v806 = vunpack.c.l.b16 %v774
  %v807 = vunpack.c.l.b16 %v775
  %v808 = vunpack.c.l.b16 %v776
  %v809 = vunpack.c.l.b16 %v777
  %v810 = vunpack.c.l.b16 %v778
  %v811 = vunpack.c.l.b16 %v779
  %v812 = vunpack.c.l.b16 %v780
  %v813 = vunpack.c.l.b16 %v781
  %v814 = vunpack.c.l.b16 %v782
  %v815 = vunpack.c.l.b16 %v783
  %v816 = vunpack.c.l.b16 %v784
  %v817 = vunpack.c.l.b16 %v785
  %v818 = vunpack.c.l.b16 %v786
  %v819 = vunpack.c.l.b16 %v787
  %v820 = vpack.c.b16 %v804, %v804
  %v821 = vpack.c.b16 %v805, %v805
  %v822 = vpack.c.b16 %v806, %v806
  %v823 = vpack.c.b16 %v807, %v807
  %v824 = vpack.c.b16 %v808, %v808
  %v825 = vpack.c.b16 %v809, %v809
  %v826 = vpack.c.b16 %v810, %v810
  %v827 = vpack.c.b16 %v811, %v811
  %v828 = vpack.c.b16 %v812, %v812
  %v829 = vpack.c.b16 %v813, %v813
  %v830 = vpack.c.b16 %v814, %v814
  %v831 = vpack.c.b16 %v815, %v815
  %v832 = vpack.c.b16 %v816, %v816
  %v833 = vpack.c.b16 %v817, %v817
  %v834 = vpack.c.b16 %v818, %v818
  %v835 = vpack.c.b16 %v819, %v819
  %v836 = vunpack.c.l.b16 %v820
  %v837 = vunpack.c.l.b16 %v821
  %v838 = vunpack.c.l.b16 %v822
  %v839 = vunpack.c.l.b16 %v823
  %v840 = vunpack.c.l.b16 %v824
  %v841 = vunpack.c.l.b16 %v825
  %v842 = vunpack.c.l.b16 %v826
  %v843 = vunpack.c.l.b16 %v827
  %v844 = vunpack.c.l.b16 %v828
  %v845 = vunpack.c.l.b16 %v829
  %v846 = vunpack.c.l.b16 %v830
  %v847 = vunpack.c.l.b16 %v831
  %v848 = vunpack.c.l.b16 %v832
  %v849 = vunpack.c.l.b16 %v833
  %v850 = vunpack.c.l.b16 %v834
  %v851 = vunpack.c.l.b16 %v835
  %vm852 = vcmask 1041409
  %v853 = vsel %vm852, %v837, %v836
  %vm854 = vcmask 1042434
  %v855 = vsel %vm854, %v838, %v853
  %vm856 = vcmask 1043459
  %v857 = vsel %vm856, %v839, %v855
  %vm858 = vcmask 1044484
  %v859 = vsel %vm858, %v840, %v857
  %vm860 = vcmask 1045509
  %v861 = vsel %vm860, %v841, %v859
  %vm862 = vcmask 1046534
  %v863 = vsel %vm862, %v842, %v861
  %vm864 = vcmask 1047559
  %v865 = vsel %vm864, %v843, %v863
  %v866 = vsel %vm852, %v845, %v844
  %v867 = vsel %vm854, %v846, %v866
  %v868 = vsel %vm856, %v847, %v867
  %v869 = vsel %vm858, %v848, %v868
  %v870 = vsel %vm860, %v849, %v869
  %v871 = vsel %vm862, %v850, %v870
  %v872 = vsel %vm864, %v851, %v871
  %v873 = vpack.c.b16 %v865, %v865
  %v874 = vpack.c.b16 %v872, %v872
  %877 = vst [vmem:[%s6] sm:$0xf] %v873
  %878 = vst [vmem:[%s6 + $0x4] sm:$0xf] %v874
  // Predicated region
  $region26: #{pointnet_sa_msg_forward.2} parent=0 // pred_check
    _
  $region27: #{pointnet_sa_msg_forward.2} parent=0 // pred_check_branch
    %880 = sbr.rel (0) target = $region29
  $region28: #{pointnet_sa_msg_forward.2} parent=0 // pred_region
    _
  $region29: #{pointnet_sa_msg_forward.2} parent=0 // pred_fallthru
    _
  // Predicated region
  $region30: #{pointnet_sa_msg_forward.2} parent=0 // pred_check
    _
  $region31: #{pointnet_sa_msg_forward.2} parent=0 // pred_check_branch
    %882 = sbr.rel (0) target = $region33
  $region32: #{pointnet_sa_msg_forward.2} parent=0 // pred_region
    _
  $region33: #{pointnet_sa_msg_forward.2} parent=0 // pred_fallthru
    _

</llo_original>
